<compile_context>
chip_gen: v7x
topology: tpu7x:2x2x1
jax: 0.10.0
libtpu: 0.0.40
codegen_flags: <defaults>
</compile_context>

<pallas_src>
import math
import numpy as np

import jax
import jax.numpy as jnp
from jax.experimental import pallas as pl
from jax.experimental.pallas import tpu as pltpu


# -----------------------------------------------------------------------------
# Pallas kernel: full LSTM stack (wavefront-fused) + fc, everything in VMEM.
# -----------------------------------------------------------------------------
def make_lstm_kernel(num_layers, hidden_size, seq_len, output_size):
    H = hidden_size
    T = seq_len
    L = num_layers
    G = 4 * H

    def kernel(*refs):
        # refs = (x, wih0_t, b0, wwave, b_1..b_{L-1}, fc_w, fc_b, out, hbuf)
        x_ref = refs[0]
        wih0_ref = refs[1]
        b0_ref = refs[2]
        wwave_ref = refs[3]
        bias_refs = refs[4:4 + (L - 1)]
        fcw_ref = refs[4 + (L - 1)]
        fcb_ref = refs[5 + (L - 1)]
        out_ref = refs[6 + (L - 1)]
        hbuf = refs[7 + (L - 1)]              # (Bb, L*H) f32 wavefront hidden buffer

        Bb = x_ref.shape[1]
        D = x_ref.shape[2]

        # ---- load the (tiny) weights once; fine at H=32 ---------------------
        wih0 = wih0_ref[...]                   # (D, 4H)       bf16
        b0 = b0_ref[...]                       # (1, 4H)       f32   (= b_ih0 + b_hh0)
        wwave = wwave_ref[...]                 # (L*H, L*4H)   bf16  block-bidiagonal
        # Hoist bias broadcasts out of the recurrence.
        bias_b = [jnp.broadcast_to(b_ref[...], (Bb, G)) for b_ref in bias_refs]

        # ---- hoisted layer-0 input projection for ALL time steps ------------
        x_all = x_ref[...]                     # (T, Bb, D) bf16
        g0_all = (
            jnp.dot(x_all.reshape(T * Bb, D), wih0,
                    preferred_element_type=jnp.float32).reshape(T, Bb, G)
            + b0
        )                                      # (T, Bb, 4H) f32

        # ---- cell nonlinearity: sigmoid on i/f/o only, tanh on g only -------
        def activate(gates, c):
            sif = jax.nn.sigmoid(gates[:, 0:2 * H])        # i, f   (one EUP pass, 2H)
            o = jax.nn.sigmoid(gates[:, 3 * H:4 * H])      # o      (H)
            g = jnp.tanh(gates[:, 2 * H:3 * H])            # g      (H)
            c_new = sif[:, H:2 * H] * c + sif[:, 0:H] * g  # f32 cell update
            h_new = o * jnp.tanh(c_new)                    # (H)
            return h_new, c_new

        # ---- wavefront state -------------------------------------------------
        hbuf[...] = jnp.zeros((Bb, L * H), jnp.float32)
        cs = [jnp.zeros((Bb, H), jnp.float32) for _ in range(L)]
        h_last = jnp.zeros((Bb, H), jnp.float32)

        # ---- wavefront recurrence: layer l runs step t = d - l at diagonal d.
        # One fused MXU push per diagonal; serial chain T+L-1 instead of T*L.
        for d in range(T + L - 1):
            xh = hbuf[...].astype(jnp.bfloat16)                    # (Bb, L*H)
            gates_all = jnp.dot(xh, wwave,
                                preferred_element_type=jnp.float32)  # (Bb, L*4H)
            lo = max(0, d - T + 1)
            hi = min(d, L - 1)
            for l in range(lo, hi + 1):
                base = g0_all[d] if l == 0 else bias_b[l - 1]
                gates = gates_all[:, l * G:(l + 1) * G] + base
                h_new, cs[l] = activate(gates, cs[l])
                hbuf[:, l * H:(l + 1) * H] = h_new                 # lane-half update
                if l == L - 1:
                    h_last = h_new

        # ---- final Linear on last step of the top layer ----------------------
        fcw = fcw_ref[...]                     # (1, H) if O==1 else (H, O), f32
        fcb = fcb_ref[...]                     # (1, O) f32
        if output_size == 1:
            # VPU multiply + lane reduction instead of a 1-column MXU push.
            out = jnp.sum(h_last * fcw, axis=-1, keepdims=True) + fcb
        else:
            out = jnp.dot(h_last, fcw, preferred_element_type=jnp.float32) + fcb
        out_ref[...] = out.astype(out_ref.dtype)

    return kernel


# -----------------------------------------------------------------------------
# Parameter construction (PyTorch default init: uniform(-1/sqrt(H), 1/sqrt(H)))
# -----------------------------------------------------------------------------
def init_lstm_params(key, input_size, hidden_size, num_layers, output_size):
    params = {}
    k = 1.0 / math.sqrt(hidden_size)
    keys = jax.random.split(key, num_layers * 4 + 2)
    idx = 0
    for l in range(num_layers):
        d_in = input_size if l == 0 else hidden_size
        w_ih = jax.random.uniform(keys[idx], (4 * hidden_size, d_in), jnp.float32, -k, k); idx += 1
        w_hh = jax.random.uniform(keys[idx], (4 * hidden_size, hidden_size), jnp.float32, -k, k); idx += 1
        b_ih = jax.random.uniform(keys[idx], (4 * hidden_size,), jnp.float32, -k, k); idx += 1
        b_hh = jax.random.uniform(keys[idx], (4 * hidden_size,), jnp.float32, -k, k); idx += 1
        params[f"w_ih_{l}"] = w_ih
        params[f"w_hh_{l}"] = w_hh
        params[f"b_{l}"] = b_ih + b_hh        # PyTorch adds both biases
    params["fc_w"] = jax.random.uniform(keys[idx], (output_size, hidden_size), jnp.float32, -k, k); idx += 1
    params["fc_b"] = jax.random.uniform(keys[idx], (output_size,), jnp.float32, -k, k)
    return params


# -----------------------------------------------------------------------------
# Wrapper
# -----------------------------------------------------------------------------
def lstm_model_forward(x, params, hidden_size, num_layers, output_size):
    """x: (B, T, input_size), batch_first like the PyTorch module. Returns (B, output_size)."""
    B, T, D = x.shape
    H = hidden_size
    L = num_layers
    G = 4 * H

    # Time-major input, bf16 MXU operand.
    x_tm = jnp.transpose(x, (1, 0, 2)).astype(jnp.bfloat16)          # (T, B, D)

    # Layer-0 input projection weight (used in the hoisted pre-loop matmul).
    wih0_t = jnp.transpose(params["w_ih_0"]).astype(jnp.bfloat16)     # (D, 4H)
    b0 = params["b_0"].reshape(1, G).astype(jnp.float32)

    # Block-bidiagonal wavefront weight (L*H, L*4H):
    #   rows of h_l carry W_hh_l^T into layer-l gate columns and
    #   W_ih_{l+1}^T into layer-(l+1) gate columns.
    wwave = jnp.zeros((L * H, L * G), jnp.float32)
    for l in range(L):
        wwave = wwave.at[l * H:(l + 1) * H, l * G:(l + 1) * G].set(params[f"w_hh_{l}"].T)
        if l + 1 < L:
            wwave = wwave.at[l * H:(l + 1) * H, (l + 1) * G:(l + 2) * G].set(params[f"w_ih_{l + 1}"].T)
    wwave = wwave.astype(jnp.bfloat16)

    biases = [params[f"b_{l}"].reshape(1, G).astype(jnp.float32) for l in range(1, L)]

    if output_size == 1:
        fc_w = params["fc_w"].astype(jnp.float32)                     # (1, H) for VPU path
    else:
        fc_w = jnp.transpose(params["fc_w"]).astype(jnp.float32)      # (H, O)
    fc_b = params["fc_b"].reshape(1, output_size).astype(jnp.float32)

    inputs = [x_tm, wih0_t, b0, wwave, *biases, fc_w, fc_b]

    # Batch-grid split: only worthwhile with >=2 TensorCores per chip (v7x).
    # On single-TC v5e/v6e a grid=(2,) is a serial loop that runs the whole
    # recurrence twice, so force a single block there.
    nb, bblk = 1, B
    sem = ("arbitrary",)
    try:
        kind = jax.devices()[0].device_kind.lower()
    except Exception:
        kind = ""
    if ("v7" in kind) and (B >= 16) and ((B // 2) % 8 == 0):
        nb, bblk = 2, B // 2
        sem = (pltpu.CORE_PARALLEL,)   # shard the batch axis across the two TCs

    in_specs = [pl.BlockSpec((T, bblk, D), lambda b: (0, b, 0))]
    for w in inputs[1:]:
        # Full-shape blocks with constant index_map: weights stay VMEM-resident.
        in_specs.append(pl.BlockSpec(w.shape, lambda b, _nd=w.ndim: (0,) * _nd))
    out_spec = pl.BlockSpec((bblk, output_size), lambda b: (b, 0))

    kernel = make_lstm_kernel(L, H, T, output_size)

    out = pl.pallas_call(
        kernel,
        out_shape=jax.ShapeDtypeStruct((B, output_size), jnp.float32),
        grid=(nb,),
        in_specs=in_specs,
        out_specs=out_spec,
        scratch_shapes=[pltpu.VMEM((bblk, L * H), jnp.float32)],  # wavefront h buffer
        compiler_params=pltpu.CompilerParams(dimension_semantics=sem),
    )(*inputs)
    return out


# -----------------------------------------------------------------------------
# Pure-JAX f32 reference (PyTorch LSTM semantics) for a sanity check.
# -----------------------------------------------------------------------------
def lstm_model_reference(x, params, hidden_size, num_layers, output_size):
    B, T, D = x.shape
    H = hidden_size
    hs = [jnp.zeros((B, H), jnp.float32) for _ in range(num_layers)]
    cs = [jnp.zeros((B, H), jnp.float32) for _ in range(num_layers)]
    for t in range(T):
        inp = x[:, t, :]
        for l in range(num_layers):
            gates = (inp @ params[f"w_ih_{l}"].T
                     + hs[l] @ params[f"w_hh_{l}"].T
                     + params[f"b_{l}"])
            i = jax.nn.sigmoid(gates[:, 0 * H:1 * H])
            f = jax.nn.sigmoid(gates[:, 1 * H:2 * H])
            g = jnp.tanh(gates[:, 2 * H:3 * H])
            o = jax.nn.sigmoid(gates[:, 3 * H:4 * H])
            cs[l] = f * cs[l] + i * g
            hs[l] = o * jnp.tanh(cs[l])
            inp = hs[l]
    return hs[-1] @ params["fc_w"].T + params["fc_b"]


if __name__ == "__main__":
    # Small shapes consistent with the module's forward.
    batch, seq_len = 8, 8
    input_size, hidden_size, num_layers, output_size = 16, 32, 2, 1

    key = jax.random.PRNGKey(0)
    kx, kp = jax.random.split(key)
    x = jax.random.normal(kx, (batch, seq_len, input_size), jnp.float32)
    params = init_lstm_params(kp, input_size, hidden_size, num_layers, output_size)

    out = jax.block_until_ready(
        lstm_model_forward(x, params, hidden_size, num_layers, output_size))
    ref = jax.block_until_ready(
        lstm_model_reference(x, params, hidden_size, num_layers, output_size))

    # bf16 MXU operands with f32 accumulation and f32 cell state: tolerance
    # relaxed vs. the pure-f32 reference accordingly.
    np.testing.assert_allclose(np.asarray(out), np.asarray(ref), rtol=1e-2, atol=1e-2)

    print("KERNEL_OK")
</pallas_src>

<mosaic_0001>
module attributes {stable_mosaic.version = 11 : i64} {
  func.func @kernel(%arg0: i32, %arg1: memref<8x8x16xbf16, #tpu.memory_space<vmem>>, %arg2: memref<16x128xbf16, #tpu.memory_space<vmem>>, %arg3: memref<1x128xf32, #tpu.memory_space<vmem>>, %arg4: memref<64x256xbf16, #tpu.memory_space<vmem>>, %arg5: memref<1x128xf32, #tpu.memory_space<vmem>>, %arg6: memref<1x32xf32, #tpu.memory_space<vmem>>, %arg7: memref<1x1xf32, #tpu.memory_space<vmem>>, %arg8: memref<8x1xf32, #tpu.memory_space<vmem>>, %arg9: memref<8x64xf32, #tpu.memory_space<vmem>>) attributes {dimension_semantics = [#tpu.dimension_semantics<arbitrary>], iteration_bounds = array<i64: 1>, scalar_prefetch = 0 : i64, scratch_operands = 1 : i64, tpu.core_type = #tpu.core_type<tc>, window_params = [{transform_indices = @transform_0, window_bounds = array<i64: 8, 8, 16>}, {pipeline_mode = #tpu.pipeline_mode<synchronous>, transform_indices = @transform_1, window_bounds = array<i64: 16, 128>}, {pipeline_mode = #tpu.pipeline_mode<synchronous>, transform_indices = @transform_2, window_bounds = array<i64: 1, 128>}, {pipeline_mode = #tpu.pipeline_mode<synchronous>, transform_indices = @transform_3, window_bounds = array<i64: 64, 256>}, {pipeline_mode = #tpu.pipeline_mode<synchronous>, transform_indices = @transform_4, window_bounds = array<i64: 1, 128>}, {pipeline_mode = #tpu.pipeline_mode<synchronous>, transform_indices = @transform_5, window_bounds = array<i64: 1, 32>}, {pipeline_mode = #tpu.pipeline_mode<synchronous>, transform_indices = @transform_6, window_bounds = array<i64: 1, 1>}, {transform_indices = @transform_7, window_bounds = array<i64: 8, 1>}]} {
    %c0 = arith.constant 0 : index
    %c0_0 = arith.constant 0 : index
    %0 = vector.load %arg2[%c0, %c0_0] : memref<16x128xbf16, #tpu.memory_space<vmem>>, vector<16x128xbf16>
    %c0_1 = arith.constant 0 : index
    %c0_2 = arith.constant 0 : index
    %1 = vector.load %arg3[%c0_1, %c0_2] : memref<1x128xf32, #tpu.memory_space<vmem>>, vector<1x128xf32>
    %c0_3 = arith.constant 0 : index
    %c0_4 = arith.constant 0 : index
    %2 = vector.load %arg4[%c0_3, %c0_4] : memref<64x256xbf16, #tpu.memory_space<vmem>>, vector<64x256xbf16>
    %c0_5 = arith.constant 0 : index
    %c0_6 = arith.constant 0 : index
    %3 = vector.load %arg5[%c0_5, %c0_6] : memref<1x128xf32, #tpu.memory_space<vmem>>, vector<1x128xf32>
    %4 = vector.shape_cast %3 : vector<1x128xf32> to vector<1x128xf32>
    %5 = vector.broadcast %4 : vector<1x128xf32> to vector<8x128xf32>
    %c0_7 = arith.constant 0 : index
    %c0_8 = arith.constant 0 : index
    %c0_9 = arith.constant 0 : index
    %6 = vector.load %arg1[%c0_7, %c0_8, %c0_9] : memref<8x8x16xbf16, #tpu.memory_space<vmem>>, vector<8x8x16xbf16>
    %7 = vector.shape_cast %6 : vector<8x8x16xbf16> to vector<64x16xbf16>
    %cst = arith.constant dense<0.000000e+00> : vector<64x128xf32>
    %8 = tpu.matmul %7, %0, %cst {dimension_numbers = #tpu.dot_dimension_numbers<[1], [0], [0], [1], [0, 0, 1, 1], [], []>} : vector<64x16xbf16>, vector<16x128xbf16>, vector<64x128xf32> -> vector<64x128xf32>
    %9 = vector.shape_cast %8 : vector<64x128xf32> to vector<8x8x128xf32>
    %10 = vector.shape_cast %1 : vector<1x128xf32> to vector<1x1x128xf32>
    %11 = vector.broadcast %10 : vector<1x1x128xf32> to vector<8x8x128xf32>
    %12 = arith.addf %9, %11 : vector<8x8x128xf32>
    %cst_10 = arith.constant 0.000000e+00 : f32
    %13 = vector.broadcast %cst_10 : f32 to vector<8x64xf32>
    %c0_11 = arith.constant 0 : index
    %c0_12 = arith.constant 0 : index
    %14 = vector.load %arg9[%c0_11, %c0_12] : memref<8x64xf32, #tpu.memory_space<vmem>>, vector<8x64xf32>
    tpu.vector_store %arg9[%c0_11, %c0_12], %13 {strides = array<i32>} : memref<8x64xf32, #tpu.memory_space<vmem>>, vector<8x64xf32>,
    %cst_13 = arith.constant 0.000000e+00 : f32
    %15 = vector.broadcast %cst_13 : f32 to vector<8x32xf32>
    %cst_14 = arith.constant 0.000000e+00 : f32
    %16 = vector.broadcast %cst_14 : f32 to vector<8x32xf32>
    %c0_15 = arith.constant 0 : index
    %c0_16 = arith.constant 0 : index
    %17 = vector.load %arg9[%c0_15, %c0_16] : memref<8x64xf32, #tpu.memory_space<vmem>>, vector<8x64xf32>
    %18 = arith.truncf %17 : vector<8x64xf32> to vector<8x64xbf16>
    %cst_17 = arith.constant dense<0.000000e+00> : vector<8x256xf32>
    %19 = tpu.matmul %18, %2, %cst_17 {dimension_numbers = #tpu.dot_dimension_numbers<[1], [0], [0], [1], [0, 0, 1, 1], [], []>} : vector<8x64xbf16>, vector<64x256xbf16>, vector<8x256xf32> -> vector<8x256xf32>
    %20 = vector.extract_strided_slice %12 {offsets = [0, 0, 0], sizes = [1, 8, 128], strides = [1, 1, 1]} : vector<8x8x128xf32> to vector<1x8x128xf32>
    %21 = vector.shape_cast %20 : vector<1x8x128xf32> to vector<8x128xf32>
    %22 = vector.extract_strided_slice %19 {offsets = [0, 0], sizes = [8, 128], strides = [1, 1]} : vector<8x256xf32> to vector<8x128xf32>
    %23 = arith.addf %22, %21 : vector<8x128xf32>
    %24 = vector.extract_strided_slice %23 {offsets = [0, 0], sizes = [8, 64], strides = [1, 1]} : vector<8x128xf32> to vector<8x64xf32>
    %25 = arith.negf %24 : vector<8x64xf32>
    %26 = math.exp %25 : vector<8x64xf32>
    %cst_18 = arith.constant 1.000000e+00 : f32
    %27 = vector.broadcast %cst_18 : f32 to vector<8x64xf32>
    %28 = arith.addf %27, %26 : vector<8x64xf32>
    %29 = arith.divf %27, %28 : vector<8x64xf32>
    %30 = vector.extract_strided_slice %23 {offsets = [0, 96], sizes = [8, 32], strides = [1, 1]} : vector<8x128xf32> to vector<8x32xf32>
    %31 = arith.negf %30 : vector<8x32xf32>
    %32 = math.exp %31 : vector<8x32xf32>
    %cst_19 = arith.constant 1.000000e+00 : f32
    %33 = vector.broadcast %cst_19 : f32 to vector<8x32xf32>
    %34 = arith.addf %33, %32 : vector<8x32xf32>
    %35 = arith.divf %33, %34 : vector<8x32xf32>
    %36 = vector.extract_strided_slice %23 {offsets = [0, 64], sizes = [8, 32], strides = [1, 1]} : vector<8x128xf32> to vector<8x32xf32>
    %37 = math.tanh %36 : vector<8x32xf32>
    %38 = vector.extract_strided_slice %29 {offsets = [0, 32], sizes = [8, 32], strides = [1, 1]} : vector<8x64xf32> to vector<8x32xf32>
    %39 = arith.mulf %38, %15 : vector<8x32xf32>
    %40 = vector.extract_strided_slice %29 {offsets = [0, 0], sizes = [8, 32], strides = [1, 1]} : vector<8x64xf32> to vector<8x32xf32>
    %41 = arith.mulf %40, %37 : vector<8x32xf32>
    %42 = arith.addf %39, %41 : vector<8x32xf32>
    %43 = math.tanh %42 : vector<8x32xf32>
    %44 = arith.mulf %35, %43 : vector<8x32xf32>
    %c0_20 = arith.constant 0 : index
    %c0_21 = arith.constant 0 : index
    %45 = vector.load %arg9[%c0_20, %c0_21] : memref<8x64xf32, #tpu.memory_space<vmem>>, vector<8x32xf32>
    tpu.vector_store %arg9[%c0_20, %c0_21], %44 {strides = array<i32>} : memref<8x64xf32, #tpu.memory_space<vmem>>, vector<8x32xf32>,
    %c0_22 = arith.constant 0 : index
    %c0_23 = arith.constant 0 : index
    %46 = vector.load %arg9[%c0_22, %c0_23] : memref<8x64xf32, #tpu.memory_space<vmem>>, vector<8x64xf32>
    %47 = arith.truncf %46 : vector<8x64xf32> to vector<8x64xbf16>
    %cst_24 = arith.constant dense<0.000000e+00> : vector<8x256xf32>
    %48 = tpu.matmul %47, %2, %cst_24 {dimension_numbers = #tpu.dot_dimension_numbers<[1], [0], [0], [1], [0, 0, 1, 1], [], []>} : vector<8x64xbf16>, vector<64x256xbf16>, vector<8x256xf32> -> vector<8x256xf32>
    %49 = vector.extract_strided_slice %12 {offsets = [1, 0, 0], sizes = [1, 8, 128], strides = [1, 1, 1]} : vector<8x8x128xf32> to vector<1x8x128xf32>
    %50 = vector.shape_cast %49 : vector<1x8x128xf32> to vector<8x128xf32>
    %51 = vector.extract_strided_slice %48 {offsets = [0, 0], sizes = [8, 128], strides = [1, 1]} : vector<8x256xf32> to vector<8x128xf32>
    %52 = arith.addf %51, %50 : vector<8x128xf32>
    %53 = vector.extract_strided_slice %52 {offsets = [0, 0], sizes = [8, 64], strides = [1, 1]} : vector<8x128xf32> to vector<8x64xf32>
    %54 = arith.negf %53 : vector<8x64xf32>
    %55 = math.exp %54 : vector<8x64xf32>
    %cst_25 = arith.constant 1.000000e+00 : f32
    %56 = vector.broadcast %cst_25 : f32 to vector<8x64xf32>
    %57 = arith.addf %56, %55 : vector<8x64xf32>
    %58 = arith.divf %56, %57 : vector<8x64xf32>
    %59 = vector.extract_strided_slice %52 {offsets = [0, 96], sizes = [8, 32], strides = [1, 1]} : vector<8x128xf32> to vector<8x32xf32>
    %60 = arith.negf %59 : vector<8x32xf32>
    %61 = math.exp %60 : vector<8x32xf32>
    %cst_26 = arith.constant 1.000000e+00 : f32
    %62 = vector.broadcast %cst_26 : f32 to vector<8x32xf32>
    %63 = arith.addf %62, %61 : vector<8x32xf32>
    %64 = arith.divf %62, %63 : vector<8x32xf32>
    %65 = vector.extract_strided_slice %52 {offsets = [0, 64], sizes = [8, 32], strides = [1, 1]} : vector<8x128xf32> to vector<8x32xf32>
    %66 = math.tanh %65 : vector<8x32xf32>
    %67 = vector.extract_strided_slice %58 {offsets = [0, 32], sizes = [8, 32], strides = [1, 1]} : vector<8x64xf32> to vector<8x32xf32>
    %68 = arith.mulf %67, %42 : vector<8x32xf32>
    %69 = vector.extract_strided_slice %58 {offsets = [0, 0], sizes = [8, 32], strides = [1, 1]} : vector<8x64xf32> to vector<8x32xf32>
    %70 = arith.mulf %69, %66 : vector<8x32xf32>
    %71 = arith.addf %68, %70 : vector<8x32xf32>
    %72 = math.tanh %71 : vector<8x32xf32>
    %73 = arith.mulf %64, %72 : vector<8x32xf32>
    %c0_27 = arith.constant 0 : index
    %c0_28 = arith.constant 0 : index
    %74 = vector.load %arg9[%c0_27, %c0_28] : memref<8x64xf32, #tpu.memory_space<vmem>>, vector<8x32xf32>
    tpu.vector_store %arg9[%c0_27, %c0_28], %73 {strides = array<i32>} : memref<8x64xf32, #tpu.memory_space<vmem>>, vector<8x32xf32>,
    %75 = vector.extract_strided_slice %48 {offsets = [0, 128], sizes = [8, 128], strides = [1, 1]} : vector<8x256xf32> to vector<8x128xf32>
    %76 = arith.addf %75, %5 : vector<8x128xf32>
    %77 = vector.extract_strided_slice %76 {offsets = [0, 0], sizes = [8, 64], strides = [1, 1]} : vector<8x128xf32> to vector<8x64xf32>
    %78 = arith.negf %77 : vector<8x64xf32>
    %79 = math.exp %78 : vector<8x64xf32>
    %cst_29 = arith.constant 1.000000e+00 : f32
    %80 = vector.broadcast %cst_29 : f32 to vector<8x64xf32>
    %81 = arith.addf %80, %79 : vector<8x64xf32>
    %82 = arith.divf %80, %81 : vector<8x64xf32>
    %83 = vector.extract_strided_slice %76 {offsets = [0, 96], sizes = [8, 32], strides = [1, 1]} : vector<8x128xf32> to vector<8x32xf32>
    %84 = arith.negf %83 : vector<8x32xf32>
    %85 = math.exp %84 : vector<8x32xf32>
    %cst_30 = arith.constant 1.000000e+00 : f32
    %86 = vector.broadcast %cst_30 : f32 to vector<8x32xf32>
    %87 = arith.addf %86, %85 : vector<8x32xf32>
    %88 = arith.divf %86, %87 : vector<8x32xf32>
    %89 = vector.extract_strided_slice %76 {offsets = [0, 64], sizes = [8, 32], strides = [1, 1]} : vector<8x128xf32> to vector<8x32xf32>
    %90 = math.tanh %89 : vector<8x32xf32>
    %91 = vector.extract_strided_slice %82 {offsets = [0, 32], sizes = [8, 32], strides = [1, 1]} : vector<8x64xf32> to vector<8x32xf32>
    %92 = arith.mulf %91, %16 : vector<8x32xf32>
    %93 = vector.extract_strided_slice %82 {offsets = [0, 0], sizes = [8, 32], strides = [1, 1]} : vector<8x64xf32> to vector<8x32xf32>
    %94 = arith.mulf %93, %90 : vector<8x32xf32>
    %95 = arith.addf %92, %94 : vector<8x32xf32>
    %96 = math.tanh %95 : vector<8x32xf32>
    %97 = arith.mulf %88, %96 : vector<8x32xf32>
    %c0_31 = arith.constant 0 : index
    %c32 = arith.constant 32 : index
    %98 = vector.load %arg9[%c0_31, %c32] : memref<8x64xf32, #tpu.memory_space<vmem>>, vector<8x32xf32>
    tpu.vector_store %arg9[%c0_31, %c32], %97 {strides = array<i32>} : memref<8x64xf32, #tpu.memory_space<vmem>>, vector<8x32xf32>,
    %c0_32 = arith.constant 0 : index
    %c0_33 = arith.constant 0 : index
    %99 = vector.load %arg9[%c0_32, %c0_33] : memref<8x64xf32, #tpu.memory_space<vmem>>, vector<8x64xf32>
    %100 = arith.truncf %99 : vector<8x64xf32> to vector<8x64xbf16>
    %cst_34 = arith.constant dense<0.000000e+00> : vector<8x256xf32>
    %101 = tpu.matmul %100, %2, %cst_34 {dimension_numbers = #tpu.dot_dimension_numbers<[1], [0], [0], [1], [0, 0, 1, 1], [], []>} : vector<8x64xbf16>, vector<64x256xbf16>, vector<8x256xf32> -> vector<8x256xf32>
    %102 = vector.extract_strided_slice %12 {offsets = [2, 0, 0], sizes = [1, 8, 128], strides = [1, 1, 1]} : vector<8x8x128xf32> to vector<1x8x128xf32>
    %103 = vector.shape_cast %102 : vector<1x8x128xf32> to vector<8x128xf32>
    %104 = vector.extract_strided_slice %101 {offsets = [0, 0], sizes = [8, 128], strides = [1, 1]} : vector<8x256xf32> to vector<8x128xf32>
    %105 = arith.addf %104, %103 : vector<8x128xf32>
    %106 = vector.extract_strided_slice %105 {offsets = [0, 0], sizes = [8, 64], strides = [1, 1]} : vector<8x128xf32> to vector<8x64xf32>
    %107 = arith.negf %106 : vector<8x64xf32>
    %108 = math.exp %107 : vector<8x64xf32>
    %cst_35 = arith.constant 1.000000e+00 : f32
    %109 = vector.broadcast %cst_35 : f32 to vector<8x64xf32>
    %110 = arith.addf %109, %108 : vector<8x64xf32>
    %111 = arith.divf %109, %110 : vector<8x64xf32>
    %112 = vector.extract_strided_slice %105 {offsets = [0, 96], sizes = [8, 32], strides = [1, 1]} : vector<8x128xf32> to vector<8x32xf32>
    %113 = arith.negf %112 : vector<8x32xf32>
    %114 = math.exp %113 : vector<8x32xf32>
    %cst_36 = arith.constant 1.000000e+00 : f32
    %115 = vector.broadcast %cst_36 : f32 to vector<8x32xf32>
    %116 = arith.addf %115, %114 : vector<8x32xf32>
    %117 = arith.divf %115, %116 : vector<8x32xf32>
    %118 = vector.extract_strided_slice %105 {offsets = [0, 64], sizes = [8, 32], strides = [1, 1]} : vector<8x128xf32> to vector<8x32xf32>
    %119 = math.tanh %118 : vector<8x32xf32>
    %120 = vector.extract_strided_slice %111 {offsets = [0, 32], sizes = [8, 32], strides = [1, 1]} : vector<8x64xf32> to vector<8x32xf32>
    %121 = arith.mulf %120, %71 : vector<8x32xf32>
    %122 = vector.extract_strided_slice %111 {offsets = [0, 0], sizes = [8, 32], strides = [1, 1]} : vector<8x64xf32> to vector<8x32xf32>
    %123 = arith.mulf %122, %119 : vector<8x32xf32>
    %124 = arith.addf %121, %123 : vector<8x32xf32>
    %125 = math.tanh %124 : vector<8x32xf32>
    %126 = arith.mulf %117, %125 : vector<8x32xf32>
    %c0_37 = arith.constant 0 : index
    %c0_38 = arith.constant 0 : index
    %127 = vector.load %arg9[%c0_37, %c0_38] : memref<8x64xf32, #tpu.memory_space<vmem>>, vector<8x32xf32>
    tpu.vector_store %arg9[%c0_37, %c0_38], %126 {strides = array<i32>} : memref<8x64xf32, #tpu.memory_space<vmem>>, vector<8x32xf32>,
    %128 = vector.extract_strided_slice %101 {offsets = [0, 128], sizes = [8, 128], strides = [1, 1]} : vector<8x256xf32> to vector<8x128xf32>
    %129 = arith.addf %128, %5 : vector<8x128xf32>
    %130 = vector.extract_strided_slice %129 {offsets = [0, 0], sizes = [8, 64], strides = [1, 1]} : vector<8x128xf32> to vector<8x64xf32>
    %131 = arith.negf %130 : vector<8x64xf32>
    %132 = math.exp %131 : vector<8x64xf32>
    %cst_39 = arith.constant 1.000000e+00 : f32
    %133 = vector.broadcast %cst_39 : f32 to vector<8x64xf32>
    %134 = arith.addf %133, %132 : vector<8x64xf32>
    %135 = arith.divf %133, %134 : vector<8x64xf32>
    %136 = vector.extract_strided_slice %129 {offsets = [0, 96], sizes = [8, 32], strides = [1, 1]} : vector<8x128xf32> to vector<8x32xf32>
    %137 = arith.negf %136 : vector<8x32xf32>
    %138 = math.exp %137 : vector<8x32xf32>
    %cst_40 = arith.constant 1.000000e+00 : f32
    %139 = vector.broadcast %cst_40 : f32 to vector<8x32xf32>
    %140 = arith.addf %139, %138 : vector<8x32xf32>
    %141 = arith.divf %139, %140 : vector<8x32xf32>
    %142 = vector.extract_strided_slice %129 {offsets = [0, 64], sizes = [8, 32], strides = [1, 1]} : vector<8x128xf32> to vector<8x32xf32>
    %143 = math.tanh %142 : vector<8x32xf32>
    %144 = vector.extract_strided_slice %135 {offsets = [0, 32], sizes = [8, 32], strides = [1, 1]} : vector<8x64xf32> to vector<8x32xf32>
    %145 = arith.mulf %144, %95 : vector<8x32xf32>
    %146 = vector.extract_strided_slice %135 {offsets = [0, 0], sizes = [8, 32], strides = [1, 1]} : vector<8x64xf32> to vector<8x32xf32>
    %147 = arith.mulf %146, %143 : vector<8x32xf32>
    %148 = arith.addf %145, %147 : vector<8x32xf32>
    %149 = math.tanh %148 : vector<8x32xf32>
    %150 = arith.mulf %141, %149 : vector<8x32xf32>
    %c0_41 = arith.constant 0 : index
    %c32_42 = arith.constant 32 : index
    %151 = vector.load %arg9[%c0_41, %c32_42] : memref<8x64xf32, #tpu.memory_space<vmem>>, vector<8x32xf32>
    tpu.vector_store %arg9[%c0_41, %c32_42], %150 {strides = array<i32>} : memref<8x64xf32, #tpu.memory_space<vmem>>, vector<8x32xf32>,
    %c0_43 = arith.constant 0 : index
    %c0_44 = arith.constant 0 : index
    %152 = vector.load %arg9[%c0_43, %c0_44] : memref<8x64xf32, #tpu.memory_space<vmem>>, vector<8x64xf32>
    %153 = arith.truncf %152 : vector<8x64xf32> to vector<8x64xbf16>
    %cst_45 = arith.constant dense<0.000000e+00> : vector<8x256xf32>
    %154 = tpu.matmul %153, %2, %cst_45 {dimension_numbers = #tpu.dot_dimension_numbers<[1], [0], [0], [1], [0, 0, 1, 1], [], []>} : vector<8x64xbf16>, vector<64x256xbf16>, vector<8x256xf32> -> vector<8x256xf32>
    %155 = vector.extract_strided_slice %12 {offsets = [3, 0, 0], sizes = [1, 8, 128], strides = [1, 1, 1]} : vector<8x8x128xf32> to vector<1x8x128xf32>
    %156 = vector.shape_cast %155 : vector<1x8x128xf32> to vector<8x128xf32>
    %157 = vector.extract_strided_slice %154 {offsets = [0, 0], sizes = [8, 128], strides = [1, 1]} : vector<8x256xf32> to vector<8x128xf32>
    %158 = arith.addf %157, %156 : vector<8x128xf32>
    %159 = vector.extract_strided_slice %158 {offsets = [0, 0], sizes = [8, 64], strides = [1, 1]} : vector<8x128xf32> to vector<8x64xf32>
    %160 = arith.negf %159 : vector<8x64xf32>
    %161 = math.exp %160 : vector<8x64xf32>
    %cst_46 = arith.constant 1.000000e+00 : f32
    %162 = vector.broadcast %cst_46 : f32 to vector<8x64xf32>
    %163 = arith.addf %162, %161 : vector<8x64xf32>
    %164 = arith.divf %162, %163 : vector<8x64xf32>
    %165 = vector.extract_strided_slice %158 {offsets = [0, 96], sizes = [8, 32], strides = [1, 1]} : vector<8x128xf32> to vector<8x32xf32>
    %166 = arith.negf %165 : vector<8x32xf32>
    %167 = math.exp %166 : vector<8x32xf32>
    %cst_47 = arith.constant 1.000000e+00 : f32
    %168 = vector.broadcast %cst_47 : f32 to vector<8x32xf32>
    %169 = arith.addf %168, %167 : vector<8x32xf32>
    %170 = arith.divf %168, %169 : vector<8x32xf32>
    %171 = vector.extract_strided_slice %158 {offsets = [0, 64], sizes = [8, 32], strides = [1, 1]} : vector<8x128xf32> to vector<8x32xf32>
    %172 = math.tanh %171 : vector<8x32xf32>
    %173 = vector.extract_strided_slice %164 {offsets = [0, 32], sizes = [8, 32], strides = [1, 1]} : vector<8x64xf32> to vector<8x32xf32>
    %174 = arith.mulf %173, %124 : vector<8x32xf32>
    %175 = vector.extract_strided_slice %164 {offsets = [0, 0], sizes = [8, 32], strides = [1, 1]} : vector<8x64xf32> to vector<8x32xf32>
    %176 = arith.mulf %175, %172 : vector<8x32xf32>
    %177 = arith.addf %174, %176 : vector<8x32xf32>
    %178 = math.tanh %177 : vector<8x32xf32>
    %179 = arith.mulf %170, %178 : vector<8x32xf32>
    %c0_48 = arith.constant 0 : index
    %c0_49 = arith.constant 0 : index
    %180 = vector.load %arg9[%c0_48, %c0_49] : memref<8x64xf32, #tpu.memory_space<vmem>>, vector<8x32xf32>
    tpu.vector_store %arg9[%c0_48, %c0_49], %179 {strides = array<i32>} : memref<8x64xf32, #tpu.memory_space<vmem>>, vector<8x32xf32>,
    %181 = vector.extract_strided_slice %154 {offsets = [0, 128], sizes = [8, 128], strides = [1, 1]} : vector<8x256xf32> to vector<8x128xf32>
    %182 = arith.addf %181, %5 : vector<8x128xf32>
    %183 = vector.extract_strided_slice %182 {offsets = [0, 0], sizes = [8, 64], strides = [1, 1]} : vector<8x128xf32> to vector<8x64xf32>
    %184 = arith.negf %183 : vector<8x64xf32>
    %185 = math.exp %184 : vector<8x64xf32>
    %cst_50 = arith.constant 1.000000e+00 : f32
    %186 = vector.broadcast %cst_50 : f32 to vector<8x64xf32>
    %187 = arith.addf %186, %185 : vector<8x64xf32>
    %188 = arith.divf %186, %187 : vector<8x64xf32>
    %189 = vector.extract_strided_slice %182 {offsets = [0, 96], sizes = [8, 32], strides = [1, 1]} : vector<8x128xf32> to vector<8x32xf32>
    %190 = arith.negf %189 : vector<8x32xf32>
    %191 = math.exp %190 : vector<8x32xf32>
    %cst_51 = arith.constant 1.000000e+00 : f32
    %192 = vector.broadcast %cst_51 : f32 to vector<8x32xf32>
    %193 = arith.addf %192, %191 : vector<8x32xf32>
    %194 = arith.divf %192, %193 : vector<8x32xf32>
    %195 = vector.extract_strided_slice %182 {offsets = [0, 64], sizes = [8, 32], strides = [1, 1]} : vector<8x128xf32> to vector<8x32xf32>
    %196 = math.tanh %195 : vector<8x32xf32>
    %197 = vector.extract_strided_slice %188 {offsets = [0, 32], sizes = [8, 32], strides = [1, 1]} : vector<8x64xf32> to vector<8x32xf32>
    %198 = arith.mulf %197, %148 : vector<8x32xf32>
    %199 = vector.extract_strided_slice %188 {offsets = [0, 0], sizes = [8, 32], strides = [1, 1]} : vector<8x64xf32> to vector<8x32xf32>
    %200 = arith.mulf %199, %196 : vector<8x32xf32>
    %201 = arith.addf %198, %200 : vector<8x32xf32>
    %202 = math.tanh %201 : vector<8x32xf32>
    %203 = arith.mulf %194, %202 : vector<8x32xf32>
    %c0_52 = arith.constant 0 : index
    %c32_53 = arith.constant 32 : index
    %204 = vector.load %arg9[%c0_52, %c32_53] : memref<8x64xf32, #tpu.memory_space<vmem>>, vector<8x32xf32>
    tpu.vector_store %arg9[%c0_52, %c32_53], %203 {strides = array<i32>} : memref<8x64xf32, #tpu.memory_space<vmem>>, vector<8x32xf32>,
    %c0_54 = arith.constant 0 : index
    %c0_55 = arith.constant 0 : index
    %205 = vector.load %arg9[%c0_54, %c0_55] : memref<8x64xf32, #tpu.memory_space<vmem>>, vector<8x64xf32>
    %206 = arith.truncf %205 : vector<8x64xf32> to vector<8x64xbf16>
    %cst_56 = arith.constant dense<0.000000e+00> : vector<8x256xf32>
    %207 = tpu.matmul %206, %2, %cst_56 {dimension_numbers = #tpu.dot_dimension_numbers<[1], [0], [0], [1], [0, 0, 1, 1], [], []>} : vector<8x64xbf16>, vector<64x256xbf16>, vector<8x256xf32> -> vector<8x256xf32>
    %208 = vector.extract_strided_slice %12 {offsets = [4, 0, 0], sizes = [1, 8, 128], strides = [1, 1, 1]} : vector<8x8x128xf32> to vector<1x8x128xf32>
    %209 = vector.shape_cast %208 : vector<1x8x128xf32> to vector<8x128xf32>
    %210 = vector.extract_strided_slice %207 {offsets = [0, 0], sizes = [8, 128], strides = [1, 1]} : vector<8x256xf32> to vector<8x128xf32>
    %211 = arith.addf %210, %209 : vector<8x128xf32>
    %212 = vector.extract_strided_slice %211 {offsets = [0, 0], sizes = [8, 64], strides = [1, 1]} : vector<8x128xf32> to vector<8x64xf32>
    %213 = arith.negf %212 : vector<8x64xf32>
    %214 = math.exp %213 : vector<8x64xf32>
    %cst_57 = arith.constant 1.000000e+00 : f32
    %215 = vector.broadcast %cst_57 : f32 to vector<8x64xf32>
    %216 = arith.addf %215, %214 : vector<8x64xf32>
    %217 = arith.divf %215, %216 : vector<8x64xf32>
    %218 = vector.extract_strided_slice %211 {offsets = [0, 96], sizes = [8, 32], strides = [1, 1]} : vector<8x128xf32> to vector<8x32xf32>
    %219 = arith.negf %218 : vector<8x32xf32>
    %220 = math.exp %219 : vector<8x32xf32>
    %cst_58 = arith.constant 1.000000e+00 : f32
    %221 = vector.broadcast %cst_58 : f32 to vector<8x32xf32>
    %222 = arith.addf %221, %220 : vector<8x32xf32>
    %223 = arith.divf %221, %222 : vector<8x32xf32>
    %224 = vector.extract_strided_slice %211 {offsets = [0, 64], sizes = [8, 32], strides = [1, 1]} : vector<8x128xf32> to vector<8x32xf32>
    %225 = math.tanh %224 : vector<8x32xf32>
    %226 = vector.extract_strided_slice %217 {offsets = [0, 32], sizes = [8, 32], strides = [1, 1]} : vector<8x64xf32> to vector<8x32xf32>
    %227 = arith.mulf %226, %177 : vector<8x32xf32>
    %228 = vector.extract_strided_slice %217 {offsets = [0, 0], sizes = [8, 32], strides = [1, 1]} : vector<8x64xf32> to vector<8x32xf32>
    %229 = arith.mulf %228, %225 : vector<8x32xf32>
    %230 = arith.addf %227, %229 : vector<8x32xf32>
    %231 = math.tanh %230 : vector<8x32xf32>
    %232 = arith.mulf %223, %231 : vector<8x32xf32>
    %c0_59 = arith.constant 0 : index
    %c0_60 = arith.constant 0 : index
    %233 = vector.load %arg9[%c0_59, %c0_60] : memref<8x64xf32, #tpu.memory_space<vmem>>, vector<8x32xf32>
    tpu.vector_store %arg9[%c0_59, %c0_60], %232 {strides = array<i32>} : memref<8x64xf32, #tpu.memory_space<vmem>>, vector<8x32xf32>,
    %234 = vector.extract_strided_slice %207 {offsets = [0, 128], sizes = [8, 128], strides = [1, 1]} : vector<8x256xf32> to vector<8x128xf32>
    %235 = arith.addf %234, %5 : vector<8x128xf32>
    %236 = vector.extract_strided_slice %235 {offsets = [0, 0], sizes = [8, 64], strides = [1, 1]} : vector<8x128xf32> to vector<8x64xf32>
    %237 = arith.negf %236 : vector<8x64xf32>
    %238 = math.exp %237 : vector<8x64xf32>
    %cst_61 = arith.constant 1.000000e+00 : f32
    %239 = vector.broadcast %cst_61 : f32 to vector<8x64xf32>
    %240 = arith.addf %239, %238 : vector<8x64xf32>
    %241 = arith.divf %239, %240 : vector<8x64xf32>
    %242 = vector.extract_strided_slice %235 {offsets = [0, 96], sizes = [8, 32], strides = [1, 1]} : vector<8x128xf32> to vector<8x32xf32>
    %243 = arith.negf %242 : vector<8x32xf32>
    %244 = math.exp %243 : vector<8x32xf32>
    %cst_62 = arith.constant 1.000000e+00 : f32
    %245 = vector.broadcast %cst_62 : f32 to vector<8x32xf32>
    %246 = arith.addf %245, %244 : vector<8x32xf32>
    %247 = arith.divf %245, %246 : vector<8x32xf32>
    %248 = vector.extract_strided_slice %235 {offsets = [0, 64], sizes = [8, 32], strides = [1, 1]} : vector<8x128xf32> to vector<8x32xf32>
    %249 = math.tanh %248 : vector<8x32xf32>
    %250 = vector.extract_strided_slice %241 {offsets = [0, 32], sizes = [8, 32], strides = [1, 1]} : vector<8x64xf32> to vector<8x32xf32>
    %251 = arith.mulf %250, %201 : vector<8x32xf32>
    %252 = vector.extract_strided_slice %241 {offsets = [0, 0], sizes = [8, 32], strides = [1, 1]} : vector<8x64xf32> to vector<8x32xf32>
    %253 = arith.mulf %252, %249 : vector<8x32xf32>
    %254 = arith.addf %251, %253 : vector<8x32xf32>
    %255 = math.tanh %254 : vector<8x32xf32>
    %256 = arith.mulf %247, %255 : vector<8x32xf32>
    %c0_63 = arith.constant 0 : index
    %c32_64 = arith.constant 32 : index
    %257 = vector.load %arg9[%c0_63, %c32_64] : memref<8x64xf32, #tpu.memory_space<vmem>>, vector<8x32xf32>
    tpu.vector_store %arg9[%c0_63, %c32_64], %256 {strides = array<i32>} : memref<8x64xf32, #tpu.memory_space<vmem>>, vector<8x32xf32>,
    %c0_65 = arith.constant 0 : index
    %c0_66 = arith.constant 0 : index
    %258 = vector.load %arg9[%c0_65, %c0_66] : memref<8x64xf32, #tpu.memory_space<vmem>>, vector<8x64xf32>
    %259 = arith.truncf %258 : vector<8x64xf32> to vector<8x64xbf16>
    %cst_67 = arith.constant dense<0.000000e+00> : vector<8x256xf32>
    %260 = tpu.matmul %259, %2, %cst_67 {dimension_numbers = #tpu.dot_dimension_numbers<[1], [0], [0], [1], [0, 0, 1, 1], [], []>} : vector<8x64xbf16>, vector<64x256xbf16>, vector<8x256xf32> -> vector<8x256xf32>
    %261 = vector.extract_strided_slice %12 {offsets = [5, 0, 0], sizes = [1, 8, 128], strides = [1, 1, 1]} : vector<8x8x128xf32> to vector<1x8x128xf32>
    %262 = vector.shape_cast %261 : vector<1x8x128xf32> to vector<8x128xf32>
    %263 = vector.extract_strided_slice %260 {offsets = [0, 0], sizes = [8, 128], strides = [1, 1]} : vector<8x256xf32> to vector<8x128xf32>
    %264 = arith.addf %263, %262 : vector<8x128xf32>
    %265 = vector.extract_strided_slice %264 {offsets = [0, 0], sizes = [8, 64], strides = [1, 1]} : vector<8x128xf32> to vector<8x64xf32>
    %266 = arith.negf %265 : vector<8x64xf32>
    %267 = math.exp %266 : vector<8x64xf32>
    %cst_68 = arith.constant 1.000000e+00 : f32
    %268 = vector.broadcast %cst_68 : f32 to vector<8x64xf32>
    %269 = arith.addf %268, %267 : vector<8x64xf32>
    %270 = arith.divf %268, %269 : vector<8x64xf32>
    %271 = vector.extract_strided_slice %264 {offsets = [0, 96], sizes = [8, 32], strides = [1, 1]} : vector<8x128xf32> to vector<8x32xf32>
    %272 = arith.negf %271 : vector<8x32xf32>
    %273 = math.exp %272 : vector<8x32xf32>
    %cst_69 = arith.constant 1.000000e+00 : f32
    %274 = vector.broadcast %cst_69 : f32 to vector<8x32xf32>
    %275 = arith.addf %274, %273 : vector<8x32xf32>
    %276 = arith.divf %274, %275 : vector<8x32xf32>
    %277 = vector.extract_strided_slice %264 {offsets = [0, 64], sizes = [8, 32], strides = [1, 1]} : vector<8x128xf32> to vector<8x32xf32>
    %278 = math.tanh %277 : vector<8x32xf32>
    %279 = vector.extract_strided_slice %270 {offsets = [0, 32], sizes = [8, 32], strides = [1, 1]} : vector<8x64xf32> to vector<8x32xf32>
    %280 = arith.mulf %279, %230 : vector<8x32xf32>
    %281 = vector.extract_strided_slice %270 {offsets = [0, 0], sizes = [8, 32], strides = [1, 1]} : vector<8x64xf32> to vector<8x32xf32>
    %282 = arith.mulf %281, %278 : vector<8x32xf32>
    %283 = arith.addf %280, %282 : vector<8x32xf32>
    %284 = math.tanh %283 : vector<8x32xf32>
    %285 = arith.mulf %276, %284 : vector<8x32xf32>
    %c0_70 = arith.constant 0 : index
    %c0_71 = arith.constant 0 : index
    %286 = vector.load %arg9[%c0_70, %c0_71] : memref<8x64xf32, #tpu.memory_space<vmem>>, vector<8x32xf32>
    tpu.vector_store %arg9[%c0_70, %c0_71], %285 {strides = array<i32>} : memref<8x64xf32, #tpu.memory_space<vmem>>, vector<8x32xf32>,
    %287 = vector.extract_strided_slice %260 {offsets = [0, 128], sizes = [8, 128], strides = [1, 1]} : vector<8x256xf32> to vector<8x128xf32>
    %288 = arith.addf %287, %5 : vector<8x128xf32>
    %289 = vector.extract_strided_slice %288 {offsets = [0, 0], sizes = [8, 64], strides = [1, 1]} : vector<8x128xf32> to vector<8x64xf32>
    %290 = arith.negf %289 : vector<8x64xf32>
    %291 = math.exp %290 : vector<8x64xf32>
    %cst_72 = arith.constant 1.000000e+00 : f32
    %292 = vector.broadcast %cst_72 : f32 to vector<8x64xf32>
    %293 = arith.addf %292, %291 : vector<8x64xf32>
    %294 = arith.divf %292, %293 : vector<8x64xf32>
    %295 = vector.extract_strided_slice %288 {offsets = [0, 96], sizes = [8, 32], strides = [1, 1]} : vector<8x128xf32> to vector<8x32xf32>
    %296 = arith.negf %295 : vector<8x32xf32>
    %297 = math.exp %296 : vector<8x32xf32>
    %cst_73 = arith.constant 1.000000e+00 : f32
    %298 = vector.broadcast %cst_73 : f32 to vector<8x32xf32>
    %299 = arith.addf %298, %297 : vector<8x32xf32>
    %300 = arith.divf %298, %299 : vector<8x32xf32>
    %301 = vector.extract_strided_slice %288 {offsets = [0, 64], sizes = [8, 32], strides = [1, 1]} : vector<8x128xf32> to vector<8x32xf32>
    %302 = math.tanh %301 : vector<8x32xf32>
    %303 = vector.extract_strided_slice %294 {offsets = [0, 32], sizes = [8, 32], strides = [1, 1]} : vector<8x64xf32> to vector<8x32xf32>
    %304 = arith.mulf %303, %254 : vector<8x32xf32>
    %305 = vector.extract_strided_slice %294 {offsets = [0, 0], sizes = [8, 32], strides = [1, 1]} : vector<8x64xf32> to vector<8x32xf32>
    %306 = arith.mulf %305, %302 : vector<8x32xf32>
    %307 = arith.addf %304, %306 : vector<8x32xf32>
    %308 = math.tanh %307 : vector<8x32xf32>
    %309 = arith.mulf %300, %308 : vector<8x32xf32>
    %c0_74 = arith.constant 0 : index
    %c32_75 = arith.constant 32 : index
    %310 = vector.load %arg9[%c0_74, %c32_75] : memref<8x64xf32, #tpu.memory_space<vmem>>, vector<8x32xf32>
    tpu.vector_store %arg9[%c0_74, %c32_75], %309 {strides = array<i32>} : memref<8x64xf32, #tpu.memory_space<vmem>>, vector<8x32xf32>,
    %c0_76 = arith.constant 0 : index
    %c0_77 = arith.constant 0 : index
    %311 = vector.load %arg9[%c0_76, %c0_77] : memref<8x64xf32, #tpu.memory_space<vmem>>, vector<8x64xf32>
    %312 = arith.truncf %311 : vector<8x64xf32> to vector<8x64xbf16>
    %cst_78 = arith.constant dense<0.000000e+00> : vector<8x256xf32>
    %313 = tpu.matmul %312, %2, %cst_78 {dimension_numbers = #tpu.dot_dimension_numbers<[1], [0], [0], [1], [0, 0, 1, 1], [], []>} : vector<8x64xbf16>, vector<64x256xbf16>, vector<8x256xf32> -> vector<8x256xf32>
    %314 = vector.extract_strided_slice %12 {offsets = [6, 0, 0], sizes = [1, 8, 128], strides = [1, 1, 1]} : vector<8x8x128xf32> to vector<1x8x128xf32>
    %315 = vector.shape_cast %314 : vector<1x8x128xf32> to vector<8x128xf32>
    %316 = vector.extract_strided_slice %313 {offsets = [0, 0], sizes = [8, 128], strides = [1, 1]} : vector<8x256xf32> to vector<8x128xf32>
    %317 = arith.addf %316, %315 : vector<8x128xf32>
    %318 = vector.extract_strided_slice %317 {offsets = [0, 0], sizes = [8, 64], strides = [1, 1]} : vector<8x128xf32> to vector<8x64xf32>
    %319 = arith.negf %318 : vector<8x64xf32>
    %320 = math.exp %319 : vector<8x64xf32>
    %cst_79 = arith.constant 1.000000e+00 : f32
    %321 = vector.broadcast %cst_79 : f32 to vector<8x64xf32>
    %322 = arith.addf %321, %320 : vector<8x64xf32>
    %323 = arith.divf %321, %322 : vector<8x64xf32>
    %324 = vector.extract_strided_slice %317 {offsets = [0, 96], sizes = [8, 32], strides = [1, 1]} : vector<8x128xf32> to vector<8x32xf32>
    %325 = arith.negf %324 : vector<8x32xf32>
    %326 = math.exp %325 : vector<8x32xf32>
    %cst_80 = arith.constant 1.000000e+00 : f32
    %327 = vector.broadcast %cst_80 : f32 to vector<8x32xf32>
    %328 = arith.addf %327, %326 : vector<8x32xf32>
    %329 = arith.divf %327, %328 : vector<8x32xf32>
    %330 = vector.extract_strided_slice %317 {offsets = [0, 64], sizes = [8, 32], strides = [1, 1]} : vector<8x128xf32> to vector<8x32xf32>
    %331 = math.tanh %330 : vector<8x32xf32>
    %332 = vector.extract_strided_slice %323 {offsets = [0, 32], sizes = [8, 32], strides = [1, 1]} : vector<8x64xf32> to vector<8x32xf32>
    %333 = arith.mulf %332, %283 : vector<8x32xf32>
    %334 = vector.extract_strided_slice %323 {offsets = [0, 0], sizes = [8, 32], strides = [1, 1]} : vector<8x64xf32> to vector<8x32xf32>
    %335 = arith.mulf %334, %331 : vector<8x32xf32>
    %336 = arith.addf %333, %335 : vector<8x32xf32>
    %337 = math.tanh %336 : vector<8x32xf32>
    %338 = arith.mulf %329, %337 : vector<8x32xf32>
    %c0_81 = arith.constant 0 : index
    %c0_82 = arith.constant 0 : index
    %339 = vector.load %arg9[%c0_81, %c0_82] : memref<8x64xf32, #tpu.memory_space<vmem>>, vector<8x32xf32>
    tpu.vector_store %arg9[%c0_81, %c0_82], %338 {strides = array<i32>} : memref<8x64xf32, #tpu.memory_space<vmem>>, vector<8x32xf32>,
    %340 = vector.extract_strided_slice %313 {offsets = [0, 128], sizes = [8, 128], strides = [1, 1]} : vector<8x256xf32> to vector<8x128xf32>
    %341 = arith.addf %340, %5 : vector<8x128xf32>
    %342 = vector.extract_strided_slice %341 {offsets = [0, 0], sizes = [8, 64], strides = [1, 1]} : vector<8x128xf32> to vector<8x64xf32>
    %343 = arith.negf %342 : vector<8x64xf32>
    %344 = math.exp %343 : vector<8x64xf32>
    %cst_83 = arith.constant 1.000000e+00 : f32
    %345 = vector.broadcast %cst_83 : f32 to vector<8x64xf32>
    %346 = arith.addf %345, %344 : vector<8x64xf32>
    %347 = arith.divf %345, %346 : vector<8x64xf32>
    %348 = vector.extract_strided_slice %341 {offsets = [0, 96], sizes = [8, 32], strides = [1, 1]} : vector<8x128xf32> to vector<8x32xf32>
    %349 = arith.negf %348 : vector<8x32xf32>
    %350 = math.exp %349 : vector<8x32xf32>
    %cst_84 = arith.constant 1.000000e+00 : f32
    %351 = vector.broadcast %cst_84 : f32 to vector<8x32xf32>
    %352 = arith.addf %351, %350 : vector<8x32xf32>
    %353 = arith.divf %351, %352 : vector<8x32xf32>
    %354 = vector.extract_strided_slice %341 {offsets = [0, 64], sizes = [8, 32], strides = [1, 1]} : vector<8x128xf32> to vector<8x32xf32>
    %355 = math.tanh %354 : vector<8x32xf32>
    %356 = vector.extract_strided_slice %347 {offsets = [0, 32], sizes = [8, 32], strides = [1, 1]} : vector<8x64xf32> to vector<8x32xf32>
    %357 = arith.mulf %356, %307 : vector<8x32xf32>
    %358 = vector.extract_strided_slice %347 {offsets = [0, 0], sizes = [8, 32], strides = [1, 1]} : vector<8x64xf32> to vector<8x32xf32>
    %359 = arith.mulf %358, %355 : vector<8x32xf32>
    %360 = arith.addf %357, %359 : vector<8x32xf32>
    %361 = math.tanh %360 : vector<8x32xf32>
    %362 = arith.mulf %353, %361 : vector<8x32xf32>
    %c0_85 = arith.constant 0 : index
    %c32_86 = arith.constant 32 : index
    %363 = vector.load %arg9[%c0_85, %c32_86] : memref<8x64xf32, #tpu.memory_space<vmem>>, vector<8x32xf32>
    tpu.vector_store %arg9[%c0_85, %c32_86], %362 {strides = array<i32>} : memref<8x64xf32, #tpu.memory_space<vmem>>, vector<8x32xf32>,
    %c0_87 = arith.constant 0 : index
    %c0_88 = arith.constant 0 : index
    %364 = vector.load %arg9[%c0_87, %c0_88] : memref<8x64xf32, #tpu.memory_space<vmem>>, vector<8x64xf32>
    %365 = arith.truncf %364 : vector<8x64xf32> to vector<8x64xbf16>
    %cst_89 = arith.constant dense<0.000000e+00> : vector<8x256xf32>
    %366 = tpu.matmul %365, %2, %cst_89 {dimension_numbers = #tpu.dot_dimension_numbers<[1], [0], [0], [1], [0, 0, 1, 1], [], []>} : vector<8x64xbf16>, vector<64x256xbf16>, vector<8x256xf32> -> vector<8x256xf32>
    %367 = vector.extract_strided_slice %12 {offsets = [7, 0, 0], sizes = [1, 8, 128], strides = [1, 1, 1]} : vector<8x8x128xf32> to vector<1x8x128xf32>
    %368 = vector.shape_cast %367 : vector<1x8x128xf32> to vector<8x128xf32>
    %369 = vector.extract_strided_slice %366 {offsets = [0, 0], sizes = [8, 128], strides = [1, 1]} : vector<8x256xf32> to vector<8x128xf32>
    %370 = arith.addf %369, %368 : vector<8x128xf32>
    %371 = vector.extract_strided_slice %370 {offsets = [0, 0], sizes = [8, 64], strides = [1, 1]} : vector<8x128xf32> to vector<8x64xf32>
    %372 = arith.negf %371 : vector<8x64xf32>
    %373 = math.exp %372 : vector<8x64xf32>
    %cst_90 = arith.constant 1.000000e+00 : f32
    %374 = vector.broadcast %cst_90 : f32 to vector<8x64xf32>
    %375 = arith.addf %374, %373 : vector<8x64xf32>
    %376 = arith.divf %374, %375 : vector<8x64xf32>
    %377 = vector.extract_strided_slice %370 {offsets = [0, 96], sizes = [8, 32], strides = [1, 1]} : vector<8x128xf32> to vector<8x32xf32>
    %378 = arith.negf %377 : vector<8x32xf32>
    %379 = math.exp %378 : vector<8x32xf32>
    %cst_91 = arith.constant 1.000000e+00 : f32
    %380 = vector.broadcast %cst_91 : f32 to vector<8x32xf32>
    %381 = arith.addf %380, %379 : vector<8x32xf32>
    %382 = arith.divf %380, %381 : vector<8x32xf32>
    %383 = vector.extract_strided_slice %370 {offsets = [0, 64], sizes = [8, 32], strides = [1, 1]} : vector<8x128xf32> to vector<8x32xf32>
    %384 = math.tanh %383 : vector<8x32xf32>
    %385 = vector.extract_strided_slice %376 {offsets = [0, 32], sizes = [8, 32], strides = [1, 1]} : vector<8x64xf32> to vector<8x32xf32>
    %386 = arith.mulf %385, %336 : vector<8x32xf32>
    %387 = vector.extract_strided_slice %376 {offsets = [0, 0], sizes = [8, 32], strides = [1, 1]} : vector<8x64xf32> to vector<8x32xf32>
    %388 = arith.mulf %387, %384 : vector<8x32xf32>
    %389 = arith.addf %386, %388 : vector<8x32xf32>
    %390 = math.tanh %389 : vector<8x32xf32>
    %391 = arith.mulf %382, %390 : vector<8x32xf32>
    %c0_92 = arith.constant 0 : index
    %c0_93 = arith.constant 0 : index
    %392 = vector.load %arg9[%c0_92, %c0_93] : memref<8x64xf32, #tpu.memory_space<vmem>>, vector<8x32xf32>
    tpu.vector_store %arg9[%c0_92, %c0_93], %391 {strides = array<i32>} : memref<8x64xf32, #tpu.memory_space<vmem>>, vector<8x32xf32>,
    %393 = vector.extract_strided_slice %366 {offsets = [0, 128], sizes = [8, 128], strides = [1, 1]} : vector<8x256xf32> to vector<8x128xf32>
    %394 = arith.addf %393, %5 : vector<8x128xf32>
    %395 = vector.extract_strided_slice %394 {offsets = [0, 0], sizes = [8, 64], strides = [1, 1]} : vector<8x128xf32> to vector<8x64xf32>
    %396 = arith.negf %395 : vector<8x64xf32>
    %397 = math.exp %396 : vector<8x64xf32>
    %cst_94 = arith.constant 1.000000e+00 : f32
    %398 = vector.broadcast %cst_94 : f32 to vector<8x64xf32>
    %399 = arith.addf %398, %397 : vector<8x64xf32>
    %400 = arith.divf %398, %399 : vector<8x64xf32>
    %401 = vector.extract_strided_slice %394 {offsets = [0, 96], sizes = [8, 32], strides = [1, 1]} : vector<8x128xf32> to vector<8x32xf32>
    %402 = arith.negf %401 : vector<8x32xf32>
    %403 = math.exp %402 : vector<8x32xf32>
    %cst_95 = arith.constant 1.000000e+00 : f32
    %404 = vector.broadcast %cst_95 : f32 to vector<8x32xf32>
    %405 = arith.addf %404, %403 : vector<8x32xf32>
    %406 = arith.divf %404, %405 : vector<8x32xf32>
    %407 = vector.extract_strided_slice %394 {offsets = [0, 64], sizes = [8, 32], strides = [1, 1]} : vector<8x128xf32> to vector<8x32xf32>
    %408 = math.tanh %407 : vector<8x32xf32>
    %409 = vector.extract_strided_slice %400 {offsets = [0, 32], sizes = [8, 32], strides = [1, 1]} : vector<8x64xf32> to vector<8x32xf32>
    %410 = arith.mulf %409, %360 : vector<8x32xf32>
    %411 = vector.extract_strided_slice %400 {offsets = [0, 0], sizes = [8, 32], strides = [1, 1]} : vector<8x64xf32> to vector<8x32xf32>
    %412 = arith.mulf %411, %408 : vector<8x32xf32>
    %413 = arith.addf %410, %412 : vector<8x32xf32>
    %414 = math.tanh %413 : vector<8x32xf32>
    %415 = arith.mulf %406, %414 : vector<8x32xf32>
    %c0_96 = arith.constant 0 : index
    %c32_97 = arith.constant 32 : index
    %416 = vector.load %arg9[%c0_96, %c32_97] : memref<8x64xf32, #tpu.memory_space<vmem>>, vector<8x32xf32>
    tpu.vector_store %arg9[%c0_96, %c32_97], %415 {strides = array<i32>} : memref<8x64xf32, #tpu.memory_space<vmem>>, vector<8x32xf32>,
    %c0_98 = arith.constant 0 : index
    %c0_99 = arith.constant 0 : index
    %417 = vector.load %arg9[%c0_98, %c0_99] : memref<8x64xf32, #tpu.memory_space<vmem>>, vector<8x64xf32>
    %418 = arith.truncf %417 : vector<8x64xf32> to vector<8x64xbf16>
    %cst_100 = arith.constant dense<0.000000e+00> : vector<8x256xf32>
    %419 = tpu.matmul %418, %2, %cst_100 {dimension_numbers = #tpu.dot_dimension_numbers<[1], [0], [0], [1], [0, 0, 1, 1], [], []>} : vector<8x64xbf16>, vector<64x256xbf16>, vector<8x256xf32> -> vector<8x256xf32>
    %420 = vector.extract_strided_slice %419 {offsets = [0, 128], sizes = [8, 128], strides = [1, 1]} : vector<8x256xf32> to vector<8x128xf32>
    %421 = arith.addf %420, %5 : vector<8x128xf32>
    %422 = vector.extract_strided_slice %421 {offsets = [0, 0], sizes = [8, 64], strides = [1, 1]} : vector<8x128xf32> to vector<8x64xf32>
    %423 = arith.negf %422 : vector<8x64xf32>
    %424 = math.exp %423 : vector<8x64xf32>
    %cst_101 = arith.constant 1.000000e+00 : f32
    %425 = vector.broadcast %cst_101 : f32 to vector<8x64xf32>
    %426 = arith.addf %425, %424 : vector<8x64xf32>
    %427 = arith.divf %425, %426 : vector<8x64xf32>
    %428 = vector.extract_strided_slice %421 {offsets = [0, 96], sizes = [8, 32], strides = [1, 1]} : vector<8x128xf32> to vector<8x32xf32>
    %429 = arith.negf %428 : vector<8x32xf32>
    %430 = math.exp %429 : vector<8x32xf32>
    %cst_102 = arith.constant 1.000000e+00 : f32
    %431 = vector.broadcast %cst_102 : f32 to vector<8x32xf32>
    %432 = arith.addf %431, %430 : vector<8x32xf32>
    %433 = arith.divf %431, %432 : vector<8x32xf32>
    %434 = vector.extract_strided_slice %421 {offsets = [0, 64], sizes = [8, 32], strides = [1, 1]} : vector<8x128xf32> to vector<8x32xf32>
    %435 = math.tanh %434 : vector<8x32xf32>
    %436 = vector.extract_strided_slice %427 {offsets = [0, 32], sizes = [8, 32], strides = [1, 1]} : vector<8x64xf32> to vector<8x32xf32>
    %437 = arith.mulf %436, %413 : vector<8x32xf32>
    %438 = vector.extract_strided_slice %427 {offsets = [0, 0], sizes = [8, 32], strides = [1, 1]} : vector<8x64xf32> to vector<8x32xf32>
    %439 = arith.mulf %438, %435 : vector<8x32xf32>
    %440 = arith.addf %437, %439 : vector<8x32xf32>
    %441 = math.tanh %440 : vector<8x32xf32>
    %442 = arith.mulf %433, %441 : vector<8x32xf32>
    %c0_103 = arith.constant 0 : index
    %c32_104 = arith.constant 32 : index
    %443 = vector.load %arg9[%c0_103, %c32_104] : memref<8x64xf32, #tpu.memory_space<vmem>>, vector<8x32xf32>
    tpu.vector_store %arg9[%c0_103, %c32_104], %442 {strides = array<i32>} : memref<8x64xf32, #tpu.memory_space<vmem>>, vector<8x32xf32>,
    %c0_105 = arith.constant 0 : index
    %c0_106 = arith.constant 0 : index
    %444 = vector.load %arg6[%c0_105, %c0_106] : memref<1x32xf32, #tpu.memory_space<vmem>>, vector<1x32xf32>
    %c0_107 = arith.constant 0 : index
    %c0_108 = arith.constant 0 : index
    %445 = vector.load %arg7[%c0_107, %c0_108] : memref<1x1xf32, #tpu.memory_space<vmem>>, vector<1x1xf32>
    %446 = vector.broadcast %444 : vector<1x32xf32> to vector<8x32xf32>
    %447 = arith.mulf %442, %446 : vector<8x32xf32>
    %cst_109 = arith.constant dense<0.000000e+00> : vector<8xf32>
    %448 = vector.multi_reduction <add>, %447, %cst_109 [1] : vector<8x32xf32> to vector<8xf32>
    %449 = vector.shape_cast %448 : vector<8xf32> to vector<8x1xf32>
    %450 = vector.broadcast %445 : vector<1x1xf32> to vector<8x1xf32>
    %451 = arith.addf %449, %450 : vector<8x1xf32>
    %c0_110 = arith.constant 0 : index
    %c0_111 = arith.constant 0 : index
    %452 = vector.load %arg8[%c0_110, %c0_111] : memref<8x1xf32, #tpu.memory_space<vmem>>, vector<8x1xf32>
    tpu.vector_store %arg8[%c0_110, %c0_111], %451 {strides = array<i32>} : memref<8x1xf32, #tpu.memory_space<vmem>>, vector<8x1xf32>,
    return
  }
  func.func @transform_0(%arg0: i32) -> (i32, i32, i32) {
    %c0_i32 = arith.constant 0 : i32
    %c0_i32_0 = arith.constant 0 : i32
    %c0_i32_1 = arith.constant 0 : i32
    return %c0_i32, %arg0, %c0_i32_0 : i32, i32, i32
  }
  func.func @transform_1(%arg0: i32) -> (i32, i32) {
    %c0_i32 = arith.constant 0 : i32
    %c0_i32_0 = arith.constant 0 : i32
    %c0_i32_1 = arith.constant 0 : i32
    return %c0_i32, %c0_i32_0 : i32, i32
  }
  func.func @transform_2(%arg0: i32) -> (i32, i32) {
    %c0_i32 = arith.constant 0 : i32
    %c0_i32_0 = arith.constant 0 : i32
    %c0_i32_1 = arith.constant 0 : i32
    return %c0_i32, %c0_i32_0 : i32, i32
  }
  func.func @transform_3(%arg0: i32) -> (i32, i32) {
    %c0_i32 = arith.constant 0 : i32
    %c0_i32_0 = arith.constant 0 : i32
    %c0_i32_1 = arith.constant 0 : i32
    return %c0_i32, %c0_i32_0 : i32, i32
  }
  func.func @transform_4(%arg0: i32) -> (i32, i32) {
    %c0_i32 = arith.constant 0 : i32
    %c0_i32_0 = arith.constant 0 : i32
    %c0_i32_1 = arith.constant 0 : i32
    return %c0_i32, %c0_i32_0 : i32, i32
  }
  func.func @transform_5(%arg0: i32) -> (i32, i32) {
    %c0_i32 = arith.constant 0 : i32
    %c0_i32_0 = arith.constant 0 : i32
    %c0_i32_1 = arith.constant 0 : i32
    return %c0_i32, %c0_i32_0 : i32, i32
  }
  func.func @transform_6(%arg0: i32) -> (i32, i32) {
    %c0_i32 = arith.constant 0 : i32
    %c0_i32_0 = arith.constant 0 : i32
    %c0_i32_1 = arith.constant 0 : i32
    return %c0_i32, %c0_i32_0 : i32, i32
  }
  func.func @transform_7(%arg0: i32) -> (i32, i32) {
    %c0_i32 = arith.constant 0 : i32
    %c0_i32_0 = arith.constant 0 : i32
    return %arg0, %c0_i32 : i32, i32
  }
}

</mosaic_0001>

<llo_original>
// kernel: tpu_custom_call.1
$region0: #{tpu_custom_call.1}
  #allocation0 [shape = 'u32[]', space=smem, size = 0x4, offset = 0x4, fixed_abs, tag = 'smem constant byte address 0x4 - core index']
  #allocation1 [shape = 'u32[144,128]{1,0:T(1,128)}', space=vmem, size = 0x12000, scoped, tag = 'internal scratch']
  #allocation2 [shape = 'f32[8,64]{1,0:T(8,128)}', space=vmem, size = 0x1000, scoped, tag = 'scratch operand']
  #allocation3 [shape = 'f32[1,1]{1,0:T(1,128)S(1)}', space=vmem, size = 0x200, scoped, tag = 'scoped memory for tpu_custom_call.1']
  %s0 = inlined_call_operand.hbm [shape: bf16[8,8,16], index: 0, kind: input, shape index: {}]
  %s1 = inlined_call_operand.hbm [shape: bf16[16,128], index: 1, kind: input, shape index: {}]
  %s2 = inlined_call_operand.vmem [shape: f32[1,128], index: 2, kind: input, shape index: {}]
  %s3 = inlined_call_operand.hbm [shape: bf16[64,256], index: 3, kind: input, shape index: {}]
  %s4 = inlined_call_operand.vmem [shape: f32[1,128], index: 4, kind: input, shape index: {}]
  %s5 = inlined_call_operand.vmem [shape: f32[1,32], index: 5, kind: input, shape index: {}]
  %s6 = inlined_call_operand.<no memory space> [shape: f32[1,1], index: 6, kind: input, shape index: {}]
  %s7 = inlined_call_operand.vmem [shape: f32[8,1], index: 7, kind: output, shape index: {}]
  %s8 = sld [smem:[#allocation0]]
  $region50: #{tpu_custom_call.1} parent=0
    _
  %s10 = ssub.s32 1, %s8
  %s11 = scalar_select 0, %s10, %s8
  %v12 = vstv %s6
  %13 = vst [vmem:[#allocation3] sm:$0x1] %v12
  $region1: #{tpu_custom_call.1} parent=0
    #allocation4 [shape = 'u8[16384]{0}', space=vmem, size = 0x4000, scoped, tag = 'input window, operand 0, single buffered']
    #allocation5 [shape = 's32[1]{0}', space=sflag, size = 0x4, scoped, tag = 'scoped memory for tpu_custom_call.1']
    #allocation6 [shape = 'u8[4096]{0}', space=vmem, size = 0x1000, scoped, tag = 'input window, operand 1, single buffered']
    #allocation7 [shape = 's32[1]{0}', space=sflag, size = 0x4, scoped, tag = 'scoped memory for tpu_custom_call.1']
    #allocation8 [shape = 'u8[32768]{0}', space=vmem, size = 0x8000, scoped, tag = 'input window, operand 3, single buffered']
    %14 = vsyncpa [#allocation5], 0
    %15 = vsyncpa [#allocation7], 0
    // Predicated region
    $region2: #{tpu_custom_call.1} parent=1 // pred_check
      _
    $region3: #{tpu_custom_call.1} parent=1 // pred_check_branch
      %17 = sbr.rel (0) target = $region5
    $region4: #{tpu_custom_call.1} parent=1 // pred_region
      %s19 = ssub.s32 512, 512
      %20 = vsyncadd [#allocation5], %s19
      %s21 = sshll.u32 [#allocation4], 4
      %s22 = int_to_ptr.vmem [resolvable:$true] %s21
      %27 = dma.hbm_to_vmem [thread:$0]  %s0, 512, %s22, [#allocation5], 64, 64, 4
    $region5: #{tpu_custom_call.1} parent=1 // pred_fallthru
      _
    // Predicated region
    $region6: #{tpu_custom_call.1} parent=1 // pred_check
      _
    $region7: #{tpu_custom_call.1} parent=1 // pred_check_branch
      %29 = sbr.rel (0) target = $region9
    $region8: #{tpu_custom_call.1} parent=1 // pred_region
      %s31 = ssub.s32 128, 128
      %32 = vsyncadd [#allocation7], %s31
      %s33 = sshll.u32 [#allocation6], 4
      %s34 = int_to_ptr.vmem [resolvable:$true] %s33
      %39 = dma.hbm_to_vmem [thread:$0]  %s1, 128, %s34, [#allocation7], 64, 64, 4
    $region9: #{tpu_custom_call.1} parent=1 // pred_fallthru
      _
    // Predicated region
    $region10: #{tpu_custom_call.1} parent=1 // pred_check
      _
    $region11: #{tpu_custom_call.1} parent=1 // pred_check_branch
      %41 = sbr.rel (0) target = $region13
    $region12: #{tpu_custom_call.1} parent=1 // pred_region
      _
    $region13: #{tpu_custom_call.1} parent=1 // pred_fallthru
      _
    // Predicated region
    $region14: #{tpu_custom_call.1} parent=1 // pred_check
      _
    $region15: #{tpu_custom_call.1} parent=1 // pred_check_branch
      %43 = sbr.rel (0) target = $region17
    $region16: #{tpu_custom_call.1} parent=1 // pred_region
      %s45 = ssub.s32 1024, 1024
      %46 = vsyncadd [#allocation7], %s45
      %s47 = sshll.u32 [#allocation8], 4
      %s48 = int_to_ptr.vmem [resolvable:$true] %s47
      %53 = dma.hbm_to_vmem [thread:$0]  %s3, 1024, %s48, [#allocation7], 128, 128, 8
    $region17: #{tpu_custom_call.1} parent=1 // pred_fallthru
      _
    // Predicated region
    $region18: #{tpu_custom_call.1} parent=1 // pred_check
      _
    $region19: #{tpu_custom_call.1} parent=1 // pred_check_branch
      %55 = sbr.rel (0) target = $region21
    $region20: #{tpu_custom_call.1} parent=1 // pred_region
      _
    $region21: #{tpu_custom_call.1} parent=1 // pred_fallthru
      _
    // Predicated region
    $region22: #{tpu_custom_call.1} parent=1 // pred_check
      _
    $region23: #{tpu_custom_call.1} parent=1 // pred_check_branch
      %57 = sbr.rel (0) target = $region25
    $region24: #{tpu_custom_call.1} parent=1 // pred_region
      _
    $region25: #{tpu_custom_call.1} parent=1 // pred_fallthru
      _
    // Predicated region
    $region26: #{tpu_custom_call.1} parent=1 // pred_check
      _
    $region27: #{tpu_custom_call.1} parent=1 // pred_check_branch
      %59 = sbr.rel (0) target = $region29
    $region28: #{tpu_custom_call.1} parent=1 // pred_region
      _
    $region29: #{tpu_custom_call.1} parent=1 // pred_fallthru
      _
    // Predicated region
    $region30: #{tpu_custom_call.1} parent=1 // pred_check
      _
    $region31: #{tpu_custom_call.1} parent=1 // pred_check_branch
      %61 = sbr.rel (0) target = $region33
    $region32: #{tpu_custom_call.1} parent=1 // pred_region
      %62 = dma.done [#allocation5], 512
    $region33: #{tpu_custom_call.1} parent=1 // pred_fallthru
      _
    // Predicated region
    $region34: #{tpu_custom_call.1} parent=1 // pred_check
      _
    $region35: #{tpu_custom_call.1} parent=1 // pred_check_branch
      %64 = sbr.rel (0) target = $region37
    $region36: #{tpu_custom_call.1} parent=1 // pred_region
      %65 = dma.done [#allocation7], 128
    $region37: #{tpu_custom_call.1} parent=1 // pred_fallthru
      _
    // Predicated region
    $region38: #{tpu_custom_call.1} parent=1 // pred_check
      _
    $region39: #{tpu_custom_call.1} parent=1 // pred_check_branch
      %67 = sbr.rel (0) target = $region41
    $region40: #{tpu_custom_call.1} parent=1 // pred_region
      %68 = dma.done [#allocation7], 1024
    $region41: #{tpu_custom_call.1} parent=1 // pred_fallthru
      _
    %v70 = vld [vmem:[#allocation6] sm:$0xf]
    %v71 = vld [vmem:[#allocation6 + $0x4] sm:$0xf]
    %v72 = vld [vmem:[%s2] sm:$0x1]
    %v73 = vld [vmem:[#allocation8] sm:$0xff]
    %v74 = vld [vmem:[#allocation8 + $0x8] sm:$0xff]
    %v75 = vld [vmem:[#allocation8 + $0x10] sm:$0xff]
    %v76 = vld [vmem:[#allocation8 + $0x18] sm:$0xff]
    %v77 = vld [vmem:[#allocation8 + $0x20] sm:$0xff]
    %v78 = vld [vmem:[#allocation8 + $0x28] sm:$0xff]
    %v79 = vld [vmem:[#allocation8 + $0x30] sm:$0xff]
    %v80 = vld [vmem:[#allocation8 + $0x38] sm:$0xff]
    %v81 = vld [vmem:[%s4] sm:$0x1]
    %v83 = vlaneseq
    %v84 = vshrl.u32 %v83, 7
    %v85 = vsub.s32 0, %v84
    %v86 = vrot.slane %v81, %v85
    %v88 = vld [vmem:[#allocation4] sm:$0xf]
    %v89 = vld [vmem:[#allocation4 + $0x4] sm:$0xf]
    %v90 = vld [vmem:[#allocation4 + $0x8] sm:$0xf]
    %v91 = vld [vmem:[#allocation4 + $0xc] sm:$0xf]
    %v92 = vld [vmem:[#allocation4 + $0x10] sm:$0xf]
    %v93 = vld [vmem:[#allocation4 + $0x14] sm:$0xf]
    %v94 = vld [vmem:[#allocation4 + $0x18] sm:$0xf]
    %v95 = vld [vmem:[#allocation4 + $0x1c] sm:$0xf]
    %v104 = vunpack.c.l.b16 %v88
    %v105 = vunpack.c.l.b16 %v89
    %v106 = vunpack.c.l.b16 %v90
    %v107 = vunpack.c.l.b16 %v91
    %v108 = vunpack.c.l.b16 %v92
    %v109 = vunpack.c.l.b16 %v93
    %v110 = vunpack.c.l.b16 %v94
    %v111 = vunpack.c.l.b16 %v95
    %v112 = vpack.c.b16 %v105, %v104
    %v113 = vpack.c.b16 %v107, %v106
    %v114 = vpack.c.b16 %v109, %v108
    %v115 = vpack.c.b16 %v111, %v110
    %v118 = vunpack.c.l.b16 %v70
    %v119 = vunpack.c.l.b16 %v71
    %v120 = vpack.c.b16 %v119, %v118
    %vm122 = vcmask 130048
    %v124 = vsel %vm122, %v112, 0
    %v127 = vsel %vm122, %v113, 0
    %v130 = vsel %vm122, %v114, 0
    %v133 = vsel %vm122, %v115, 0
    %135 = vmatprep.subr.bf16.mxu0 0
    %136 = vmatpush1.bf16.msra.mxu0 %v120
    %137 = vmatprep.subr.bf16.mxu0 0
    %138 = vmatpush1.bf16.msra.mxu0 0
    %139 = vmatprep.subr.bf16.mxu0 0
    %140 = vmatpush1.bf16.msra.mxu0 0
    %141 = vmatprep.subr.bf16.mxu0 0
    %142 = vmatpush1.bf16.msra.mxu0 0
    %143 = vmatprep.subr.bf16.mxu0 0
    %144 = vmatpush1.bf16.msra.mxu0 0
    %145 = vmatprep.subr.bf16.mxu0 0
    %146 = vmatpush1.bf16.msra.mxu0 0
    %147 = vmatprep.subr.bf16.mxu0 0
    %148 = vmatpush1.bf16.msra.mxu0 0
    %149 = vmatprep.subr.bf16.mxu0 0
    %150 = vmatpush1.bf16.msra.mxu0 0
    %151 = vmatprep.subr.bf16.mxu0 0
    %152 = vmatpush1.bf16.msra.mxu0 0
    %153 = vmatprep.subr.bf16.mxu0 0
    %154 = vmatpush1.bf16.msra.mxu0 0
    %155 = vmatprep.subr.bf16.mxu0 0
    %156 = vmatpush1.bf16.msra.mxu0 0
    %157 = vmatprep.subr.bf16.mxu0 0
    %158 = vmatpush1.bf16.msra.mxu0 0
    %159 = vmatprep.subr.bf16.mxu0 0
    %160 = vmatpush1.bf16.msra.mxu0 0
    %161 = vmatprep.subr.bf16.mxu0 0
    %162 = vmatpush1.bf16.msra.mxu0 0
    %163 = vmatprep.subr.bf16.mxu0 0
    %164 = vmatpush1.bf16.msra.mxu0 0
    %165 = vmatprep.subr.bf16.mxu0 0
    %166 = vmatpush1.bf16.msra.mxu0 0
    %167 = vmatprep.mubr.bf16.mxu0 0
    %168 = vmatmul.mubr.bf16.gmra.mrb[0].mxu0 %v124
    %v169 = vpop.f32.mrb[0].mxu0
    %v170 = vadd.f32 0.0, %v169
    %v171 = vpop.f32.mrb[0].mxu0
    %v172 = vpop.f32.mrb[0].mxu0
    %v173 = vadd.f32 0.0, %v172
    %v174 = vpop.f32.mrb[0].mxu0
    %175 = vmatprep.mubr.bf16.mxu0 0
    %176 = vmatmul.mubr.bf16.gmra.mrb[0].mxu0 %v127
    %v177 = vpop.f32.mrb[0].mxu0
    %v178 = vadd.f32 0.0, %v177
    %v179 = vpop.f32.mrb[0].mxu0
    %v180 = vpop.f32.mrb[0].mxu0
    %v181 = vadd.f32 0.0, %v180
    %v182 = vpop.f32.mrb[0].mxu0
    %183 = vmatprep.mubr.bf16.mxu0 0
    %184 = vmatmul.mubr.bf16.gmra.mrb[0].mxu0 %v130
    %v185 = vpop.f32.mrb[0].mxu0
    %v186 = vadd.f32 0.0, %v185
    %v187 = vpop.f32.mrb[0].mxu0
    %v188 = vpop.f32.mrb[0].mxu0
    %v189 = vadd.f32 0.0, %v188
    %v190 = vpop.f32.mrb[0].mxu0
    %191 = vmatprep.mubr.bf16.mxu0 0
    %192 = vmatmul.mubr.bf16.gmra.mrb[0].mxu0 %v133
    %v193 = vpop.f32.mrb[0].mxu0
    %v194 = vadd.f32 0.0, %v193
    %v195 = vpop.f32.mrb[0].mxu0
    %v196 = vpop.f32.mrb[0].mxu0
    %v197 = vadd.f32 0.0, %v196
    %v198 = vpop.f32.mrb[0].mxu0
    %199 = vdwg.mxu0
    %v201 = vlaneseq
    %v202 = vshrl.u32 %v201, 7
    %v203 = vsub.s32 0, %v202
    %v204 = vrot.slane %v72, %v203
    %v206 = vadd.f32 %v170, %v204
    %v207 = vadd.f32 %v173, %v204
    %v208 = vadd.f32 %v178, %v204
    %v209 = vadd.f32 %v181, %v204
    %v210 = vadd.f32 %v186, %v204
    %v211 = vadd.f32 %v189, %v204
    %v212 = vadd.f32 %v194, %v204
    %v213 = vadd.f32 %v197, %v204
    %vm214 = vcmask 523264
    %215 = vst.msk [vmem:[#allocation2] sm:$0xff] %vm214, 0.0
    %v216 = vld [vmem:[#allocation2] sm:$0xff]
    %v217 = vpack.c.bf16 %v216, %v216
    %v226 = vunpack.c.l.b16 %v73
    %v227 = vunpack.c.h.b16 %v73
    %v228 = vunpack.c.l.b16 %v74
    %v229 = vunpack.c.h.b16 %v74
    %v230 = vunpack.c.l.b16 %v75
    %v231 = vunpack.c.h.b16 %v75
    %v232 = vunpack.c.l.b16 %v76
    %v233 = vunpack.c.h.b16 %v76
    %v234 = vunpack.c.l.b16 %v77
    %v235 = vunpack.c.h.b16 %v77
    %v236 = vunpack.c.l.b16 %v78
    %v237 = vunpack.c.h.b16 %v78
    %v238 = vunpack.c.l.b16 %v79
    %v239 = vunpack.c.h.b16 %v79
    %v240 = vunpack.c.l.b16 %v80
    %v241 = vunpack.c.h.b16 %v80
    %v242 = vpack.c.b16 %v228, %v226
    %v243 = vpack.c.b16 %v229, %v227
    %v244 = vpack.c.b16 %v232, %v230
    %v245 = vpack.c.b16 %v233, %v231
    %v246 = vpack.c.b16 %v236, %v234
    %v247 = vpack.c.b16 %v237, %v235
    %v248 = vpack.c.b16 %v240, %v238
    %v249 = vpack.c.b16 %v241, %v239
    %v259 = vsel %vm214, %v217, 0
    %261 = vmatprep.subr.bf16.mxu0 %v243
    %262 = vmatpush1.bf16.msra.mxu0 %v242
    %263 = vmatprep.subr.bf16.mxu0 %v245
    %264 = vmatpush1.bf16.msra.mxu0 %v244
    %265 = vmatprep.subr.bf16.mxu0 %v247
    %266 = vmatpush1.bf16.msra.mxu0 %v246
    %267 = vmatprep.subr.bf16.mxu0 %v249
    %268 = vmatpush1.bf16.msra.mxu0 %v248
    %269 = vmatprep.subr.bf16.mxu0 0
    %270 = vmatpush1.bf16.msra.mxu0 0
    %271 = vmatprep.subr.bf16.mxu0 0
    %272 = vmatpush1.bf16.msra.mxu0 0
    %273 = vmatprep.subr.bf16.mxu0 0
    %274 = vmatpush1.bf16.msra.mxu0 0
    %275 = vmatprep.subr.bf16.mxu0 0
    %276 = vmatpush1.bf16.msra.mxu0 0
    %277 = vmatprep.subr.bf16.mxu0 0
    %278 = vmatpush1.bf16.msra.mxu0 0
    %279 = vmatprep.subr.bf16.mxu0 0
    %280 = vmatpush1.bf16.msra.mxu0 0
    %281 = vmatprep.subr.bf16.mxu0 0
    %282 = vmatpush1.bf16.msra.mxu0 0
    %283 = vmatprep.subr.bf16.mxu0 0
    %284 = vmatpush1.bf16.msra.mxu0 0
    %285 = vmatprep.subr.bf16.mxu0 0
    %286 = vmatpush1.bf16.msra.mxu0 0
    %287 = vmatprep.subr.bf16.mxu0 0
    %288 = vmatpush1.bf16.msra.mxu0 0
    %289 = vmatprep.subr.bf16.mxu0 0
    %290 = vmatpush1.bf16.msra.mxu0 0
    %291 = vmatprep.subr.bf16.mxu0 0
    %292 = vmatpush1.bf16.msra.mxu0 0
    %293 = vmatprep.mubr.bf16.mxu0 0
    %294 = vmatmul.mubr.bf16.gmra.mrb[0].mxu0 %v259
    %v295 = vpop.f32.mrb[0].mxu0
    %v296 = vadd.f32 0.0, %v295
    %v297 = vpop.f32.mrb[0].mxu0
    %v298 = vpop.f32.mrb[0].mxu0
    %v299 = vpop.f32.mrb[0].mxu0
    %300 = vdwg.mxu0
    %v301 = vadd.f32 %v296, %v206
    %v302 = vxor.u32 %v301, 2147483648
    %v303 = vmul.f32 %v302, 1.442695
    %v304 = vpow.pop %v303
    %v305 = vadd.f32 %v304, 1.0
    %v306 = vrcp.pop %v305
    %v307 = vmul.f32 1.0, %v306
    %v308 = vtanh.pop %v301
    %v309 = vmul.f32 %v307, 0.0
    %311 = vrot.lane.b32.xlu0 %v308, 64
    %v312 = vpop.permute.xlu0 %311
    %v314 = vmul.f32 %v307, %v312
    %316 = vrot.lane.b32.xlu0 %v314, 32
    %v317 = vpop.permute.xlu0 %316
    %v319 = vadd.f32 %v309, %v317
    %v320 = vtanh.pop %v319
    %322 = vrot.lane.b32.xlu0 %v320, 64
    %v323 = vpop.permute.xlu0 %322
    %v325 = vmul.f32 %v307, %v323
    %327 = vrot.lane.b32.xlu0 %v325, 32
    %v328 = vpop.permute.xlu0 %327
    %vm330 = vcmask 261120
    %331 = vst.msk [vmem:[#allocation2] sm:$0xff] %vm330, %v328
    %v332 = vld [vmem:[#allocation2] sm:$0xff]
    %v333 = vpack.c.bf16 %v332, %v332
    %v335 = vsel %vm214, %v333, 0
    %337 = vmatprep.subr.bf16.mxu0 %v243
    %338 = vmatpush1.bf16.msra.mxu0 %v242
    %339 = vmatprep.subr.bf16.mxu0 %v245
    %340 = vmatpush1.bf16.msra.mxu0 %v244
    %341 = vmatprep.subr.bf16.mxu0 %v247
    %342 = vmatpush1.bf16.msra.mxu0 %v246
    %343 = vmatprep.subr.bf16.mxu0 %v249
    %344 = vmatpush1.bf16.msra.mxu0 %v248
    %345 = vmatprep.subr.bf16.mxu0 0
    %346 = vmatpush1.bf16.msra.mxu0 0
    %347 = vmatprep.subr.bf16.mxu0 0
    %348 = vmatpush1.bf16.msra.mxu0 0
    %349 = vmatprep.subr.bf16.mxu0 0
    %350 = vmatpush1.bf16.msra.mxu0 0
    %351 = vmatprep.subr.bf16.mxu0 0
    %352 = vmatpush1.bf16.msra.mxu0 0
    %353 = vmatprep.subr.bf16.mxu0 0
    %354 = vmatpush1.bf16.msra.mxu0 0
    %355 = vmatprep.subr.bf16.mxu0 0
    %356 = vmatpush1.bf16.msra.mxu0 0
    %357 = vmatprep.subr.bf16.mxu0 0
    %358 = vmatpush1.bf16.msra.mxu0 0
    %359 = vmatprep.subr.bf16.mxu0 0
    %360 = vmatpush1.bf16.msra.mxu0 0
    %361 = vmatprep.subr.bf16.mxu0 0
    %362 = vmatpush1.bf16.msra.mxu0 0
    %363 = vmatprep.subr.bf16.mxu0 0
    %364 = vmatpush1.bf16.msra.mxu0 0
    %365 = vmatprep.subr.bf16.mxu0 0
    %366 = vmatpush1.bf16.msra.mxu0 0
    %367 = vmatprep.subr.bf16.mxu0 0
    %368 = vmatpush1.bf16.msra.mxu0 0
    %369 = vmatprep.mubr.bf16.mxu0 0
    %370 = vmatmul.mubr.bf16.gmra.mrb[0].mxu0 %v335
    %v371 = vpop.f32.mrb[0].mxu0
    %v372 = vadd.f32 0.0, %v371
    %v373 = vpop.f32.mrb[0].mxu0
    %v374 = vadd.f32 0.0, %v373
    %v375 = vpop.f32.mrb[0].mxu0
    %v376 = vpop.f32.mrb[0].mxu0
    %377 = vdwg.mxu0
    %v378 = vadd.f32 %v372, %v207
    %v379 = vxor.u32 %v378, 2147483648
    %v380 = vmul.f32 %v379, 1.442695
    %v381 = vpow.pop %v380
    %v382 = vadd.f32 %v381, 1.0
    %v383 = vrcp.pop %v382
    %v384 = vmul.f32 1.0, %v383
    %v385 = vtanh.pop %v378
    %v386 = vmul.f32 %v384, %v319
    %388 = vrot.lane.b32.xlu0 %v385, 64
    %v389 = vpop.permute.xlu0 %388
    %v391 = vmul.f32 %v384, %v389
    %393 = vrot.lane.b32.xlu0 %v391, 32
    %v394 = vpop.permute.xlu0 %393
    %v396 = vadd.f32 %v386, %v394
    %v397 = vtanh.pop %v396
    %399 = vrot.lane.b32.xlu0 %v397, 64
    %v400 = vpop.permute.xlu0 %399
    %v402 = vmul.f32 %v384, %v400
    %404 = vrot.lane.b32.xlu0 %v402, 32
    %v405 = vpop.permute.xlu0 %404
    %407 = vst.msk [vmem:[#allocation2] sm:$0xff] %vm330, %v405
    %v408 = vadd.f32 %v374, %v86
    %v409 = vxor.u32 %v408, 2147483648
    %v410 = vmul.f32 %v409, 1.442695
    %v411 = vpow.pop %v410
    %v412 = vadd.f32 %v411, 1.0
    %v413 = vrcp.pop %v412
    %v414 = vmul.f32 1.0, %v413
    %v415 = vtanh.pop %v408
    %v416 = vmul.f32 %v414, 0.0
    %418 = vrot.lane.b32.xlu0 %v415, 64
    %v419 = vpop.permute.xlu0 %418
    %v421 = vmul.f32 %v414, %v419
    %423 = vrot.lane.b32.xlu0 %v421, 32
    %v424 = vpop.permute.xlu0 %423
    %v426 = vadd.f32 %v416, %v424
    %v427 = vtanh.pop %v426
    %429 = vrot.lane.b32.xlu0 %v427, 64
    %v430 = vpop.permute.xlu0 %429
    %v432 = vmul.f32 %v414, %v430
    %434 = vrot.lane.b32.xlu0 %v432, 64
    %v435 = vpop.permute.xlu0 %434
    %vm437 = vcmask 523520
    %438 = vst.msk [vmem:[#allocation2] sm:$0xff] %vm437, %v435
    %v439 = vld [vmem:[#allocation2] sm:$0xff]
    %v440 = vpack.c.bf16 %v439, %v439
    %v442 = vsel %vm214, %v440, 0
    %444 = vmatprep.subr.bf16.mxu0 %v243
    %445 = vmatpush1.bf16.msra.mxu0 %v242
    %446 = vmatprep.subr.bf16.mxu0 %v245
    %447 = vmatpush1.bf16.msra.mxu0 %v244
    %448 = vmatprep.subr.bf16.mxu0 %v247
    %449 = vmatpush1.bf16.msra.mxu0 %v246
    %450 = vmatprep.subr.bf16.mxu0 %v249
    %451 = vmatpush1.bf16.msra.mxu0 %v248
    %452 = vmatprep.subr.bf16.mxu0 0
    %453 = vmatpush1.bf16.msra.mxu0 0
    %454 = vmatprep.subr.bf16.mxu0 0
    %455 = vmatpush1.bf16.msra.mxu0 0
    %456 = vmatprep.subr.bf16.mxu0 0
    %457 = vmatpush1.bf16.msra.mxu0 0
    %458 = vmatprep.subr.bf16.mxu0 0
    %459 = vmatpush1.bf16.msra.mxu0 0
    %460 = vmatprep.subr.bf16.mxu0 0
    %461 = vmatpush1.bf16.msra.mxu0 0
    %462 = vmatprep.subr.bf16.mxu0 0
    %463 = vmatpush1.bf16.msra.mxu0 0
    %464 = vmatprep.subr.bf16.mxu0 0
    %465 = vmatpush1.bf16.msra.mxu0 0
    %466 = vmatprep.subr.bf16.mxu0 0
    %467 = vmatpush1.bf16.msra.mxu0 0
    %468 = vmatprep.subr.bf16.mxu0 0
    %469 = vmatpush1.bf16.msra.mxu0 0
    %470 = vmatprep.subr.bf16.mxu0 0
    %471 = vmatpush1.bf16.msra.mxu0 0
    %472 = vmatprep.subr.bf16.mxu0 0
    %473 = vmatpush1.bf16.msra.mxu0 0
    %474 = vmatprep.subr.bf16.mxu0 0
    %475 = vmatpush1.bf16.msra.mxu0 0
    %476 = vmatprep.mubr.bf16.mxu0 0
    %477 = vmatmul.mubr.bf16.gmra.mrb[0].mxu0 %v442
    %v478 = vpop.f32.mrb[0].mxu0
    %v479 = vadd.f32 0.0, %v478
    %v480 = vpop.f32.mrb[0].mxu0
    %v481 = vadd.f32 0.0, %v480
    %v482 = vpop.f32.mrb[0].mxu0
    %v483 = vpop.f32.mrb[0].mxu0
    %484 = vdwg.mxu0
    %v485 = vadd.f32 %v479, %v208
    %v486 = vxor.u32 %v485, 2147483648
    %v487 = vmul.f32 %v486, 1.442695
    %v488 = vpow.pop %v487
    %v489 = vadd.f32 %v488, 1.0
    %v490 = vrcp.pop %v489
    %v491 = vmul.f32 1.0, %v490
    %v492 = vtanh.pop %v485
    %v493 = vmul.f32 %v491, %v396
    %495 = vrot.lane.b32.xlu0 %v492, 64
    %v496 = vpop.permute.xlu0 %495
    %v498 = vmul.f32 %v491, %v496
    %500 = vrot.lane.b32.xlu0 %v498, 32
    %v501 = vpop.permute.xlu0 %500
    %v503 = vadd.f32 %v493, %v501
    %v504 = vtanh.pop %v503
    %506 = vrot.lane.b32.xlu0 %v504, 64
    %v507 = vpop.permute.xlu0 %506
    %v509 = vmul.f32 %v491, %v507
    %511 = vrot.lane.b32.xlu0 %v509, 32
    %v512 = vpop.permute.xlu0 %511
    %514 = vst.msk [vmem:[#allocation2] sm:$0xff] %vm330, %v512
    %v515 = vadd.f32 %v481, %v86
    %v516 = vxor.u32 %v515, 2147483648
    %v517 = vmul.f32 %v516, 1.442695
    %v518 = vpow.pop %v517
    %v519 = vadd.f32 %v518, 1.0
    %v520 = vrcp.pop %v519
    %v521 = vmul.f32 1.0, %v520
    %v522 = vtanh.pop %v515
    %v523 = vmul.f32 %v521, %v426
    %525 = vrot.lane.b32.xlu0 %v522, 64
    %v526 = vpop.permute.xlu0 %525
    %v528 = vmul.f32 %v521, %v526
    %530 = vrot.lane.b32.xlu0 %v528, 32
    %v531 = vpop.permute.xlu0 %530
    %v533 = vadd.f32 %v523, %v531
    %v534 = vtanh.pop %v533
    %536 = vrot.lane.b32.xlu0 %v534, 64
    %v537 = vpop.permute.xlu0 %536
    %v539 = vmul.f32 %v521, %v537
    %541 = vrot.lane.b32.xlu0 %v539, 64
    %v542 = vpop.permute.xlu0 %541
    %544 = vst.msk [vmem:[#allocation2] sm:$0xff] %vm437, %v542
    %v545 = vld [vmem:[#allocation2] sm:$0xff]
    %v546 = vpack.c.bf16 %v545, %v545
    %v548 = vsel %vm214, %v546, 0
    %550 = vmatprep.subr.bf16.mxu0 %v243
    %551 = vmatpush1.bf16.msra.mxu0 %v242
    %552 = vmatprep.subr.bf16.mxu0 %v245
    %553 = vmatpush1.bf16.msra.mxu0 %v244
    %554 = vmatprep.subr.bf16.mxu0 %v247
    %555 = vmatpush1.bf16.msra.mxu0 %v246
    %556 = vmatprep.subr.bf16.mxu0 %v249
    %557 = vmatpush1.bf16.msra.mxu0 %v248
    %558 = vmatprep.subr.bf16.mxu0 0
    %559 = vmatpush1.bf16.msra.mxu0 0
    %560 = vmatprep.subr.bf16.mxu0 0
    %561 = vmatpush1.bf16.msra.mxu0 0
    %562 = vmatprep.subr.bf16.mxu0 0
    %563 = vmatpush1.bf16.msra.mxu0 0
    %564 = vmatprep.subr.bf16.mxu0 0
    %565 = vmatpush1.bf16.msra.mxu0 0
    %566 = vmatprep.subr.bf16.mxu0 0
    %567 = vmatpush1.bf16.msra.mxu0 0
    %568 = vmatprep.subr.bf16.mxu0 0
    %569 = vmatpush1.bf16.msra.mxu0 0
    %570 = vmatprep.subr.bf16.mxu0 0
    %571 = vmatpush1.bf16.msra.mxu0 0
    %572 = vmatprep.subr.bf16.mxu0 0
    %573 = vmatpush1.bf16.msra.mxu0 0
    %574 = vmatprep.subr.bf16.mxu0 0
    %575 = vmatpush1.bf16.msra.mxu0 0
    %576 = vmatprep.subr.bf16.mxu0 0
    %577 = vmatpush1.bf16.msra.mxu0 0
    %578 = vmatprep.subr.bf16.mxu0 0
    %579 = vmatpush1.bf16.msra.mxu0 0
    %580 = vmatprep.subr.bf16.mxu0 0
    %581 = vmatpush1.bf16.msra.mxu0 0
    %582 = vmatprep.mubr.bf16.mxu0 0
    %583 = vmatmul.mubr.bf16.gmra.mrb[0].mxu0 %v548
    %v584 = vpop.f32.mrb[0].mxu0
    %v585 = vadd.f32 0.0, %v584
    %v586 = vpop.f32.mrb[0].mxu0
    %v587 = vadd.f32 0.0, %v586
    %v588 = vpop.f32.mrb[0].mxu0
    %v589 = vpop.f32.mrb[0].mxu0
    %590 = vdwg.mxu0
    %v591 = vadd.f32 %v585, %v209
    %v592 = vxor.u32 %v591, 2147483648
    %v593 = vmul.f32 %v592, 1.442695
    %v594 = vpow.pop %v593
    %v595 = vadd.f32 %v594, 1.0
    %v596 = vrcp.pop %v595
    %v597 = vmul.f32 1.0, %v596
    %v598 = vtanh.pop %v591
    %v599 = vmul.f32 %v597, %v503
    %601 = vrot.lane.b32.xlu0 %v598, 64
    %v602 = vpop.permute.xlu0 %601
    %v604 = vmul.f32 %v597, %v602
    %606 = vrot.lane.b32.xlu0 %v604, 32
    %v607 = vpop.permute.xlu0 %606
    %v609 = vadd.f32 %v599, %v607
    %v610 = vtanh.pop %v609
    %612 = vrot.lane.b32.xlu0 %v610, 64
    %v613 = vpop.permute.xlu0 %612
    %v615 = vmul.f32 %v597, %v613
    %617 = vrot.lane.b32.xlu0 %v615, 32
    %v618 = vpop.permute.xlu0 %617
    %620 = vst.msk [vmem:[#allocation2] sm:$0xff] %vm330, %v618
    %v621 = vadd.f32 %v587, %v86
    %v622 = vxor.u32 %v621, 2147483648
    %v623 = vmul.f32 %v622, 1.442695
    %v624 = vpow.pop %v623
    %v625 = vadd.f32 %v624, 1.0
    %v626 = vrcp.pop %v625
    %v627 = vmul.f32 1.0, %v626
    %v628 = vtanh.pop %v621
    %v629 = vmul.f32 %v627, %v533
    %631 = vrot.lane.b32.xlu0 %v628, 64
    %v632 = vpop.permute.xlu0 %631
    %v634 = vmul.f32 %v627, %v632
    %636 = vrot.lane.b32.xlu0 %v634, 32
    %v637 = vpop.permute.xlu0 %636
    %v639 = vadd.f32 %v629, %v637
    %v640 = vtanh.pop %v639
    %642 = vrot.lane.b32.xlu0 %v640, 64
    %v643 = vpop.permute.xlu0 %642
    %v645 = vmul.f32 %v627, %v643
    %647 = vrot.lane.b32.xlu0 %v645, 64
    %v648 = vpop.permute.xlu0 %647
    %650 = vst.msk [vmem:[#allocation2] sm:$0xff] %vm437, %v648
    %v651 = vld [vmem:[#allocation2] sm:$0xff]
    %v652 = vpack.c.bf16 %v651, %v651
    %v654 = vsel %vm214, %v652, 0
    %656 = vmatprep.subr.bf16.mxu0 %v243
    %657 = vmatpush1.bf16.msra.mxu0 %v242
    %658 = vmatprep.subr.bf16.mxu0 %v245
    %659 = vmatpush1.bf16.msra.mxu0 %v244
    %660 = vmatprep.subr.bf16.mxu0 %v247
    %661 = vmatpush1.bf16.msra.mxu0 %v246
    %662 = vmatprep.subr.bf16.mxu0 %v249
    %663 = vmatpush1.bf16.msra.mxu0 %v248
    %664 = vmatprep.subr.bf16.mxu0 0
    %665 = vmatpush1.bf16.msra.mxu0 0
    %666 = vmatprep.subr.bf16.mxu0 0
    %667 = vmatpush1.bf16.msra.mxu0 0
    %668 = vmatprep.subr.bf16.mxu0 0
    %669 = vmatpush1.bf16.msra.mxu0 0
    %670 = vmatprep.subr.bf16.mxu0 0
    %671 = vmatpush1.bf16.msra.mxu0 0
    %672 = vmatprep.subr.bf16.mxu0 0
    %673 = vmatpush1.bf16.msra.mxu0 0
    %674 = vmatprep.subr.bf16.mxu0 0
    %675 = vmatpush1.bf16.msra.mxu0 0
    %676 = vmatprep.subr.bf16.mxu0 0
    %677 = vmatpush1.bf16.msra.mxu0 0
    %678 = vmatprep.subr.bf16.mxu0 0
    %679 = vmatpush1.bf16.msra.mxu0 0
    %680 = vmatprep.subr.bf16.mxu0 0
    %681 = vmatpush1.bf16.msra.mxu0 0
    %682 = vmatprep.subr.bf16.mxu0 0
    %683 = vmatpush1.bf16.msra.mxu0 0
    %684 = vmatprep.subr.bf16.mxu0 0
    %685 = vmatpush1.bf16.msra.mxu0 0
    %686 = vmatprep.subr.bf16.mxu0 0
    %687 = vmatpush1.bf16.msra.mxu0 0
    %688 = vmatprep.mubr.bf16.mxu0 0
    %689 = vmatmul.mubr.bf16.gmra.mrb[0].mxu0 %v654
    %v690 = vpop.f32.mrb[0].mxu0
    %v691 = vadd.f32 0.0, %v690
    %v692 = vpop.f32.mrb[0].mxu0
    %v693 = vadd.f32 0.0, %v692
    %v694 = vpop.f32.mrb[0].mxu0
    %v695 = vpop.f32.mrb[0].mxu0
    %696 = vdwg.mxu0
    %v697 = vadd.f32 %v691, %v210
    %v698 = vxor.u32 %v697, 2147483648
    %v699 = vmul.f32 %v698, 1.442695
    %v700 = vpow.pop %v699
    %v701 = vadd.f32 %v700, 1.0
    %v702 = vrcp.pop %v701
    %v703 = vmul.f32 1.0, %v702
    %v704 = vtanh.pop %v697
    %v705 = vmul.f32 %v703, %v609
    %707 = vrot.lane.b32.xlu0 %v704, 64
    %v708 = vpop.permute.xlu0 %707
    %v710 = vmul.f32 %v703, %v708
    %712 = vrot.lane.b32.xlu0 %v710, 32
    %v713 = vpop.permute.xlu0 %712
    %v715 = vadd.f32 %v705, %v713
    %v716 = vtanh.pop %v715
    %718 = vrot.lane.b32.xlu0 %v716, 64
    %v719 = vpop.permute.xlu0 %718
    %v721 = vmul.f32 %v703, %v719
    %723 = vrot.lane.b32.xlu0 %v721, 32
    %v724 = vpop.permute.xlu0 %723
    %726 = vst.msk [vmem:[#allocation2] sm:$0xff] %vm330, %v724
    %v727 = vadd.f32 %v693, %v86
    %v728 = vxor.u32 %v727, 2147483648
    %v729 = vmul.f32 %v728, 1.442695
    %v730 = vpow.pop %v729
    %v731 = vadd.f32 %v730, 1.0
    %v732 = vrcp.pop %v731
    %v733 = vmul.f32 1.0, %v732
    %v734 = vtanh.pop %v727
    %v735 = vmul.f32 %v733, %v639
    %737 = vrot.lane.b32.xlu0 %v734, 64
    %v738 = vpop.permute.xlu0 %737
    %v740 = vmul.f32 %v733, %v738
    %742 = vrot.lane.b32.xlu0 %v740, 32
    %v743 = vpop.permute.xlu0 %742
    %v745 = vadd.f32 %v735, %v743
    %v746 = vtanh.pop %v745
    %748 = vrot.lane.b32.xlu0 %v746, 64
    %v749 = vpop.permute.xlu0 %748
    %v751 = vmul.f32 %v733, %v749
    %753 = vrot.lane.b32.xlu0 %v751, 64
    %v754 = vpop.permute.xlu0 %753
    %756 = vst.msk [vmem:[#allocation2] sm:$0xff] %vm437, %v754
    %v757 = vld [vmem:[#allocation2] sm:$0xff]
    %v758 = vpack.c.bf16 %v757, %v757
    %v760 = vsel %vm214, %v758, 0
    %762 = vmatprep.subr.bf16.mxu0 %v243
    %763 = vmatpush1.bf16.msra.mxu0 %v242
    %764 = vmatprep.subr.bf16.mxu0 %v245
    %765 = vmatpush1.bf16.msra.mxu0 %v244
    %766 = vmatprep.subr.bf16.mxu0 %v247
    %767 = vmatpush1.bf16.msra.mxu0 %v246
    %768 = vmatprep.subr.bf16.mxu0 %v249
    %769 = vmatpush1.bf16.msra.mxu0 %v248
    %770 = vmatprep.subr.bf16.mxu0 0
    %771 = vmatpush1.bf16.msra.mxu0 0
    %772 = vmatprep.subr.bf16.mxu0 0
    %773 = vmatpush1.bf16.msra.mxu0 0
    %774 = vmatprep.subr.bf16.mxu0 0
    %775 = vmatpush1.bf16.msra.mxu0 0
    %776 = vmatprep.subr.bf16.mxu0 0
    %777 = vmatpush1.bf16.msra.mxu0 0
    %778 = vmatprep.subr.bf16.mxu0 0
    %779 = vmatpush1.bf16.msra.mxu0 0
    %780 = vmatprep.subr.bf16.mxu0 0
    %781 = vmatpush1.bf16.msra.mxu0 0
    %782 = vmatprep.subr.bf16.mxu0 0
    %783 = vmatpush1.bf16.msra.mxu0 0
    %784 = vmatprep.subr.bf16.mxu0 0
    %785 = vmatpush1.bf16.msra.mxu0 0
    %786 = vmatprep.subr.bf16.mxu0 0
    %787 = vmatpush1.bf16.msra.mxu0 0
    %788 = vmatprep.subr.bf16.mxu0 0
    %789 = vmatpush1.bf16.msra.mxu0 0
    %790 = vmatprep.subr.bf16.mxu0 0
    %791 = vmatpush1.bf16.msra.mxu0 0
    %792 = vmatprep.subr.bf16.mxu0 0
    %793 = vmatpush1.bf16.msra.mxu0 0
    %794 = vmatprep.mubr.bf16.mxu0 0
    %795 = vmatmul.mubr.bf16.gmra.mrb[0].mxu0 %v760
    %v796 = vpop.f32.mrb[0].mxu0
    %v797 = vadd.f32 0.0, %v796
    %v798 = vpop.f32.mrb[0].mxu0
    %v799 = vadd.f32 0.0, %v798
    %v800 = vpop.f32.mrb[0].mxu0
    %v801 = vpop.f32.mrb[0].mxu0
    %802 = vdwg.mxu0
    %v803 = vadd.f32 %v797, %v211
    %v804 = vxor.u32 %v803, 2147483648
    %v805 = vmul.f32 %v804, 1.442695
    %v806 = vpow.pop %v805
    %v807 = vadd.f32 %v806, 1.0
    %v808 = vrcp.pop %v807
    %v809 = vmul.f32 1.0, %v808
    %v810 = vtanh.pop %v803
    %v811 = vmul.f32 %v809, %v715
    %813 = vrot.lane.b32.xlu0 %v810, 64
    %v814 = vpop.permute.xlu0 %813
    %v816 = vmul.f32 %v809, %v814
    %818 = vrot.lane.b32.xlu0 %v816, 32
    %v819 = vpop.permute.xlu0 %818
    %v821 = vadd.f32 %v811, %v819
    %v822 = vtanh.pop %v821
    %824 = vrot.lane.b32.xlu0 %v822, 64
    %v825 = vpop.permute.xlu0 %824
    %v827 = vmul.f32 %v809, %v825
    %829 = vrot.lane.b32.xlu0 %v827, 32
    %v830 = vpop.permute.xlu0 %829
    %832 = vst.msk [vmem:[#allocation2] sm:$0xff] %vm330, %v830
    %v833 = vadd.f32 %v799, %v86
    %v834 = vxor.u32 %v833, 2147483648
    %v835 = vmul.f32 %v834, 1.442695
    %v836 = vpow.pop %v835
    %v837 = vadd.f32 %v836, 1.0
    %v838 = vrcp.pop %v837
    %v839 = vmul.f32 1.0, %v838
    %v840 = vtanh.pop %v833
    %v841 = vmul.f32 %v839, %v745
    %843 = vrot.lane.b32.xlu0 %v840, 64
    %v844 = vpop.permute.xlu0 %843
    %v846 = vmul.f32 %v839, %v844
    %848 = vrot.lane.b32.xlu0 %v846, 32
    %v849 = vpop.permute.xlu0 %848
    %v851 = vadd.f32 %v841, %v849
    %v852 = vtanh.pop %v851
    %854 = vrot.lane.b32.xlu0 %v852, 64
    %v855 = vpop.permute.xlu0 %854
    %v857 = vmul.f32 %v839, %v855
    %859 = vrot.lane.b32.xlu0 %v857, 64
    %v860 = vpop.permute.xlu0 %859
    %862 = vst.msk [vmem:[#allocation2] sm:$0xff] %vm437, %v860
    %v863 = vld [vmem:[#allocation2] sm:$0xff]
    %v864 = vpack.c.bf16 %v863, %v863
    %v866 = vsel %vm214, %v864, 0
    %868 = vmatprep.subr.bf16.mxu0 %v243
    %869 = vmatpush1.bf16.msra.mxu0 %v242
    %870 = vmatprep.subr.bf16.mxu0 %v245
    %871 = vmatpush1.bf16.msra.mxu0 %v244
    %872 = vmatprep.subr.bf16.mxu0 %v247
    %873 = vmatpush1.bf16.msra.mxu0 %v246
    %874 = vmatprep.subr.bf16.mxu0 %v249
    %875 = vmatpush1.bf16.msra.mxu0 %v248
    %876 = vmatprep.subr.bf16.mxu0 0
    %877 = vmatpush1.bf16.msra.mxu0 0
    %878 = vmatprep.subr.bf16.mxu0 0
    %879 = vmatpush1.bf16.msra.mxu0 0
    %880 = vmatprep.subr.bf16.mxu0 0
    %881 = vmatpush1.bf16.msra.mxu0 0
    %882 = vmatprep.subr.bf16.mxu0 0
    %883 = vmatpush1.bf16.msra.mxu0 0
    %884 = vmatprep.subr.bf16.mxu0 0
    %885 = vmatpush1.bf16.msra.mxu0 0
    %886 = vmatprep.subr.bf16.mxu0 0
    %887 = vmatpush1.bf16.msra.mxu0 0
    %888 = vmatprep.subr.bf16.mxu0 0
    %889 = vmatpush1.bf16.msra.mxu0 0
    %890 = vmatprep.subr.bf16.mxu0 0
    %891 = vmatpush1.bf16.msra.mxu0 0
    %892 = vmatprep.subr.bf16.mxu0 0
    %893 = vmatpush1.bf16.msra.mxu0 0
    %894 = vmatprep.subr.bf16.mxu0 0
    %895 = vmatpush1.bf16.msra.mxu0 0
    %896 = vmatprep.subr.bf16.mxu0 0
    %897 = vmatpush1.bf16.msra.mxu0 0
    %898 = vmatprep.subr.bf16.mxu0 0
    %899 = vmatpush1.bf16.msra.mxu0 0
    %900 = vmatprep.mubr.bf16.mxu0 0
    %901 = vmatmul.mubr.bf16.gmra.mrb[0].mxu0 %v866
    %v902 = vpop.f32.mrb[0].mxu0
    %v903 = vadd.f32 0.0, %v902
    %v904 = vpop.f32.mrb[0].mxu0
    %v905 = vadd.f32 0.0, %v904
    %v906 = vpop.f32.mrb[0].mxu0
    %v907 = vpop.f32.mrb[0].mxu0
    %908 = vdwg.mxu0
    %v909 = vadd.f32 %v903, %v212
    %v910 = vxor.u32 %v909, 2147483648
    %v911 = vmul.f32 %v910, 1.442695
    %v912 = vpow.pop %v911
    %v913 = vadd.f32 %v912, 1.0
    %v914 = vrcp.pop %v913
    %v915 = vmul.f32 1.0, %v914
    %v916 = vtanh.pop %v909
    %v917 = vmul.f32 %v915, %v821
    %919 = vrot.lane.b32.xlu0 %v916, 64
    %v920 = vpop.permute.xlu0 %919
    %v922 = vmul.f32 %v915, %v920
    %924 = vrot.lane.b32.xlu0 %v922, 32
    %v925 = vpop.permute.xlu0 %924
    %v927 = vadd.f32 %v917, %v925
    %v928 = vtanh.pop %v927
    %930 = vrot.lane.b32.xlu0 %v928, 64
    %v931 = vpop.permute.xlu0 %930
    %v933 = vmul.f32 %v915, %v931
    %935 = vrot.lane.b32.xlu0 %v933, 32
    %v936 = vpop.permute.xlu0 %935
    %938 = vst.msk [vmem:[#allocation2] sm:$0xff] %vm330, %v936
    %v939 = vadd.f32 %v905, %v86
    %v940 = vxor.u32 %v939, 2147483648
    %v941 = vmul.f32 %v940, 1.442695
    %v942 = vpow.pop %v941
    %v943 = vadd.f32 %v942, 1.0
    %v944 = vrcp.pop %v943
    %v945 = vmul.f32 1.0, %v944
    %v946 = vtanh.pop %v939
    %v947 = vmul.f32 %v945, %v851
    %949 = vrot.lane.b32.xlu0 %v946, 64
    %v950 = vpop.permute.xlu0 %949
    %v952 = vmul.f32 %v945, %v950
    %954 = vrot.lane.b32.xlu0 %v952, 32
    %v955 = vpop.permute.xlu0 %954
    %v957 = vadd.f32 %v947, %v955
    %v958 = vtanh.pop %v957
    %960 = vrot.lane.b32.xlu0 %v958, 64
    %v961 = vpop.permute.xlu0 %960
    %v963 = vmul.f32 %v945, %v961
    %965 = vrot.lane.b32.xlu0 %v963, 64
    %v966 = vpop.permute.xlu0 %965
    %968 = vst.msk [vmem:[#allocation2] sm:$0xff] %vm437, %v966
    %v969 = vld [vmem:[#allocation2] sm:$0xff]
    %v970 = vpack.c.bf16 %v969, %v969
    %v972 = vsel %vm214, %v970, 0
    %974 = vmatprep.subr.bf16.mxu0 %v243
    %975 = vmatpush1.bf16.msra.mxu0 %v242
    %976 = vmatprep.subr.bf16.mxu0 %v245
    %977 = vmatpush1.bf16.msra.mxu0 %v244
    %978 = vmatprep.subr.bf16.mxu0 %v247
    %979 = vmatpush1.bf16.msra.mxu0 %v246
    %980 = vmatprep.subr.bf16.mxu0 %v249
    %981 = vmatpush1.bf16.msra.mxu0 %v248
    %982 = vmatprep.subr.bf16.mxu0 0
    %983 = vmatpush1.bf16.msra.mxu0 0
    %984 = vmatprep.subr.bf16.mxu0 0
    %985 = vmatpush1.bf16.msra.mxu0 0
    %986 = vmatprep.subr.bf16.mxu0 0
    %987 = vmatpush1.bf16.msra.mxu0 0
    %988 = vmatprep.subr.bf16.mxu0 0
    %989 = vmatpush1.bf16.msra.mxu0 0
    %990 = vmatprep.subr.bf16.mxu0 0
    %991 = vmatpush1.bf16.msra.mxu0 0
    %992 = vmatprep.subr.bf16.mxu0 0
    %993 = vmatpush1.bf16.msra.mxu0 0
    %994 = vmatprep.subr.bf16.mxu0 0
    %995 = vmatpush1.bf16.msra.mxu0 0
    %996 = vmatprep.subr.bf16.mxu0 0
    %997 = vmatpush1.bf16.msra.mxu0 0
    %998 = vmatprep.subr.bf16.mxu0 0
    %999 = vmatpush1.bf16.msra.mxu0 0
    %1000 = vmatprep.subr.bf16.mxu0 0
    %1001 = vmatpush1.bf16.msra.mxu0 0
    %1002 = vmatprep.subr.bf16.mxu0 0
    %1003 = vmatpush1.bf16.msra.mxu0 0
    %1004 = vmatprep.subr.bf16.mxu0 0
    %1005 = vmatpush1.bf16.msra.mxu0 0
    %1006 = vmatprep.mubr.bf16.mxu0 0
    %1007 = vmatmul.mubr.bf16.gmra.mrb[0].mxu0 %v972
    %v1008 = vpop.f32.mrb[0].mxu0
    %v1009 = vadd.f32 0.0, %v1008
    %v1010 = vpop.f32.mrb[0].mxu0
    %v1011 = vadd.f32 0.0, %v1010
    %v1012 = vpop.f32.mrb[0].mxu0
    %v1013 = vpop.f32.mrb[0].mxu0
    %1014 = vdwg.mxu0
    %v1015 = vadd.f32 %v1009, %v213
    %v1016 = vxor.u32 %v1015, 2147483648
    %v1017 = vmul.f32 %v1016, 1.442695
    %v1018 = vpow.pop %v1017
    %v1019 = vadd.f32 %v1018, 1.0
    %v1020 = vrcp.pop %v1019
    %v1021 = vmul.f32 1.0, %v1020
    %v1022 = vtanh.pop %v1015
    %v1023 = vmul.f32 %v1021, %v927
    %1025 = vrot.lane.b32.xlu0 %v1022, 64
    %v1026 = vpop.permute.xlu0 %1025
    %v1028 = vmul.f32 %v1021, %v1026
    %1030 = vrot.lane.b32.xlu0 %v1028, 32
    %v1031 = vpop.permute.xlu0 %1030
    %v1033 = vadd.f32 %v1023, %v1031
    %v1034 = vtanh.pop %v1033
    %1036 = vrot.lane.b32.xlu0 %v1034, 64
    %v1037 = vpop.permute.xlu0 %1036
    %v1039 = vmul.f32 %v1021, %v1037
    %1041 = vrot.lane.b32.xlu0 %v1039, 32
    %v1042 = vpop.permute.xlu0 %1041
    %1044 = vst.msk [vmem:[#allocation2] sm:$0xff] %vm330, %v1042
    %v1045 = vadd.f32 %v1011, %v86
    %v1046 = vxor.u32 %v1045, 2147483648
    %v1047 = vmul.f32 %v1046, 1.442695
    %v1048 = vpow.pop %v1047
    %v1049 = vadd.f32 %v1048, 1.0
    %v1050 = vrcp.pop %v1049
    %v1051 = vmul.f32 1.0, %v1050
    %v1052 = vtanh.pop %v1045
    %v1053 = vmul.f32 %v1051, %v957
    %1055 = vrot.lane.b32.xlu0 %v1052, 64
    %v1056 = vpop.permute.xlu0 %1055
    %v1058 = vmul.f32 %v1051, %v1056
    %1060 = vrot.lane.b32.xlu0 %v1058, 32
    %v1061 = vpop.permute.xlu0 %1060
    %v1063 = vadd.f32 %v1053, %v1061
    %v1064 = vtanh.pop %v1063
    %1066 = vrot.lane.b32.xlu0 %v1064, 64
    %v1067 = vpop.permute.xlu0 %1066
    %v1069 = vmul.f32 %v1051, %v1067
    %1071 = vrot.lane.b32.xlu0 %v1069, 64
    %v1072 = vpop.permute.xlu0 %1071
    %1074 = vst.msk [vmem:[#allocation2] sm:$0xff] %vm437, %v1072
    %v1075 = vld [vmem:[#allocation2] sm:$0xff]
    %v1076 = vpack.c.bf16 %v1075, %v1075
    %v1078 = vsel %vm214, %v1076, 0
    %1080 = vmatprep.subr.bf16.mxu0 %v243
    %1081 = vmatpush1.bf16.msra.mxu0 %v242
    %1082 = vmatprep.subr.bf16.mxu0 %v245
    %1083 = vmatpush1.bf16.msra.mxu0 %v244
    %1084 = vmatprep.subr.bf16.mxu0 %v247
    %1085 = vmatpush1.bf16.msra.mxu0 %v246
    %1086 = vmatprep.subr.bf16.mxu0 %v249
    %1087 = vmatpush1.bf16.msra.mxu0 %v248
    %1088 = vmatprep.subr.bf16.mxu0 0
    %1089 = vmatpush1.bf16.msra.mxu0 0
    %1090 = vmatprep.subr.bf16.mxu0 0
    %1091 = vmatpush1.bf16.msra.mxu0 0
    %1092 = vmatprep.subr.bf16.mxu0 0
    %1093 = vmatpush1.bf16.msra.mxu0 0
    %1094 = vmatprep.subr.bf16.mxu0 0
    %1095 = vmatpush1.bf16.msra.mxu0 0
    %1096 = vmatprep.subr.bf16.mxu0 0
    %1097 = vmatpush1.bf16.msra.mxu0 0
    %1098 = vmatprep.subr.bf16.mxu0 0
    %1099 = vmatpush1.bf16.msra.mxu0 0
    %1100 = vmatprep.subr.bf16.mxu0 0
    %1101 = vmatpush1.bf16.msra.mxu0 0
    %1102 = vmatprep.subr.bf16.mxu0 0
    %1103 = vmatpush1.bf16.msra.mxu0 0
    %1104 = vmatprep.subr.bf16.mxu0 0
    %1105 = vmatpush1.bf16.msra.mxu0 0
    %1106 = vmatprep.subr.bf16.mxu0 0
    %1107 = vmatpush1.bf16.msra.mxu0 0
    %1108 = vmatprep.subr.bf16.mxu0 0
    %1109 = vmatpush1.bf16.msra.mxu0 0
    %1110 = vmatprep.subr.bf16.mxu0 0
    %1111 = vmatpush1.bf16.msra.mxu0 0
    %1112 = vmatprep.mubr.bf16.mxu0 0
    %1113 = vmatmul.mubr.bf16.gmra.mrb[0].mxu0 %v1078
    %v1114 = vpop.f32.mrb[0].mxu0
    %v1115 = vpop.f32.mrb[0].mxu0
    %v1116 = vadd.f32 0.0, %v1115
    %v1117 = vpop.f32.mrb[0].mxu0
    %v1118 = vpop.f32.mrb[0].mxu0
    %1119 = vdwg.mxu0
    %v1120 = vadd.f32 %v1116, %v86
    %v1121 = vxor.u32 %v1120, 2147483648
    %v1122 = vmul.f32 %v1121, 1.442695
    %v1123 = vpow.pop %v1122
    %v1124 = vadd.f32 %v1123, 1.0
    %v1125 = vrcp.pop %v1124
    %v1126 = vmul.f32 1.0, %v1125
    %v1127 = vtanh.pop %v1120
    %v1128 = vmul.f32 %v1126, %v1063
    %1130 = vrot.lane.b32.xlu0 %v1127, 64
    %v1131 = vpop.permute.xlu0 %1130
    %v1133 = vmul.f32 %v1126, %v1131
    %1135 = vrot.lane.b32.xlu0 %v1133, 32
    %v1136 = vpop.permute.xlu0 %1135
    %v1138 = vadd.f32 %v1128, %v1136
    %v1139 = vtanh.pop %v1138
    %1141 = vrot.lane.b32.xlu0 %v1139, 64
    %v1142 = vpop.permute.xlu0 %1141
    %v1144 = vmul.f32 %v1126, %v1142
    %1146 = vrot.lane.b32.xlu0 %v1144, 64
    %v1147 = vpop.permute.xlu0 %1146
    %1149 = vst.msk [vmem:[#allocation2] sm:$0xff] %vm437, %v1147
    %v1150 = vld [vmem:[%s5] sm:$0x1]
    %v1151 = vld [vmem:[#allocation3] sm:$0x1]
    %v1153 = vlaneseq
    %v1154 = vshrl.u32 %v1153, 7
    %v1155 = vsub.s32 0, %v1154
    %v1156 = vrot.slane %v1150, %v1155
    %1157 = vrot.lane.b32.xlu0 %v1156, 96
    %v1158 = vpop.permute.xlu0 %1157
    %v1160 = vmul.f32 %v1144, %v1158
    %1162 = vrot.lane.b32.xlu0 %v1160, 32
    %v1163 = vpop.permute.xlu0 %1162
    %v1165 = vsel %vm330, %v1163, 0.0
    %1166 = vadd.xlane.f32.xlu0 %v1165
    %v1167 = vpop.xlane.xlu0 %1166
    %v1169 = vlaneseq
    %v1170 = vshrl.u32 %v1169, 7
    %v1171 = vsub.s32 0, %v1170
    %v1172 = vrot.slane %v1151, %v1171
    %v1174 = vadd.f32 %v1167, %v1172
    %vm1175 = vcmask 7168
    %1176 = vst.msk [vmem:[%s7] sm:$0xff] %vm1175, %v1174
    // Predicated region
    $region42: #{tpu_custom_call.1} parent=1 // pred_check
      _
    $region43: #{tpu_custom_call.1} parent=1 // pred_check_branch
      %1178 = sbr.rel (0) target = $region45
    $region44: #{tpu_custom_call.1} parent=1 // pred_region
      _
    $region45: #{tpu_custom_call.1} parent=1 // pred_fallthru
      _
    // Predicated region
    $region46: #{tpu_custom_call.1} parent=1 // pred_check
      _
    $region47: #{tpu_custom_call.1} parent=1 // pred_check_branch
      %1180 = sbr.rel (0) target = $region49
    $region48: #{tpu_custom_call.1} parent=1 // pred_region
      _
    $region49: #{tpu_custom_call.1} parent=1 // pred_fallthru
      _
    %1181 = vsyncpa [#allocation5], 1
    %1182 = vsyncpa [#allocation7], 1

</llo_original>
